<compile_context>
chip_gen: v7x
topology: tpu7x:2x2x1
jax: 0.10.0
libtpu: 0.0.40
codegen_flags: <defaults>
</compile_context>

<pallas_src>
import jax
import jax.numpy as jnp
from jax.experimental import pallas as pl
from jax.experimental.pallas import tpu as pltpu

# Model dimensions: features, rules, TSK output dim, MLP hidden, MLP out.
D, R, O, H, OUT = 16, 8, 16, 32, 8
LANES = 128
assert R * O == LANES            # TSK consequents exactly fill the lane dim
assert H <= LANES and OUT <= LANES

# Packed weight-slab row layout (every region is full 128 lanes wide).
ROW_WA = 0                       # (D, 128)   x*x fuzzification weights (lane-tiled)
ROW_WB = ROW_WA + D              # (D, 128)   x   fuzzification weights (lane-tiled)
ROW_P = ROW_WB + D               # (D, 128)   flattened TSK consequent weights
ROW_W1 = ROW_P + D               # (128, 128) head w1 tiled R times along K (cols >= H zero)
ROW_W2 = ROW_W1 + LANES          # (128, 128) head w2 zero-padded (rows >= H, cols >= OUT zero)
W_ROWS = ROW_W2 + LANES          # 304 rows (multiple of 8), ~152 KiB f32


def anfis_net_kernel(xs_ref, w_ref, b_ref, o_ref):
    x = xs_ref[0]                                              # (TB, D)
    s = xs_ref[1]                                              # (TB, D)

    # ---- ANFIS layers 1+2: lane-dense log firing strengths ----------------
    #   logw[b, r*O+o] = -sum_d (x_d - c_{r,d})^2 / (2 sigma_{r,d}^2)
    # Expanded square (two K=16 accumulating matmuls + packed constant row).
    # Assumes roughly unit-scale inputs; for wildly scaled inputs the direct
    # (x-c)^2 form would be more robust.
    logw = (jnp.dot(x * x, w_ref[ROW_WA:ROW_WA + D, :],
                    preferred_element_type=jnp.float32)
            + jnp.dot(x, w_ref[ROW_WB:ROW_WB + D, :],
                      preferred_element_type=jnp.float32)
            + b_ref[0:1, :])                                   # (TB, 128)

    # ---- layer 3 numerator (stable exp); max/sum over 128 lanes equals the
    # per-rule max/sum because each rule occupies O identical lanes (the extra
    # factor O is folded into the divide below). -----------------------------
    m = jnp.max(logw, axis=-1, keepdims=True)
    e = jnp.exp(logw - m)                                      # unnormalized weights
    denom = jnp.sum(e, axis=-1, keepdims=True)                 # = O * sum_r w_r

    # ---- layers 4+5: first-order TSK consequents, rule-weighted ------------
    f = (jnp.dot(s, w_ref[ROW_P:ROW_P + D, :],
                 preferred_element_type=jnp.float32)
         + b_ref[1:2, :])                                      # (TB, 128)
    weighted = e * f                                           # still unnormalized

    # ---- NN head: Linear -> ReLU -> Linear ----------------------------------
    # The TSK sum over rules is folded into w1 (tiled R times along K); the
    # softmax normalization commutes with that matmul and is applied here with
    # an exact divide (O / denom == 1 / sum_r w_r), before bias + ReLU.
    z = jnp.dot(weighted, w_ref[ROW_W1:ROW_W1 + LANES, :],
                preferred_element_type=jnp.float32)            # (TB, 128)
    h = jnp.maximum(z * (jnp.float32(O) / denom) + b_ref[2:3, :], 0.0)

    # Lane-dense store; columns >= OUT are exactly zero and sliced off outside.
    o_ref[...] = (jnp.dot(h, w_ref[ROW_W2:ROW_W2 + LANES, :],
                          preferred_element_type=jnp.float32)
                  + b_ref[3:4, :])                             # (TB, 128)


def _pick_tb(batch):
    # Two batch tiles (one per TensorCore on v7x) when there is enough work;
    # otherwise a single tile (grid=1) so single-TC v5e/v6e pay no per-step
    # pipeline overhead.  tb always divides batch by construction.
    if batch >= 256 and batch % 16 == 0:
        return batch // 2
    return batch


def anfis_net_forward(x, centers, sigmas, P, pb, w1, b1, w2, b2, s=None, *, tb=None):
    """ANFISNet.forward(x, s): Gaussian TSK ANFIS -> 2-layer MLP head."""
    if s is None:                 # matches the module's `if s is None: s = x`
        s = x
    batch = x.shape[0]
    if tb is None:
        tb = _pick_tb(batch)
    assert batch % tb == 0

    # ---- host-side parameter packing (layout + tiny weight-only algebra) ----
    A = 1.0 / (2.0 * sigmas * sigmas)                               # (R, D)
    wa = jnp.repeat((-A).T, O, axis=1)                              # (D, R*O)
    wb = jnp.repeat((2.0 * centers * A).T, O, axis=1)               # (D, R*O)
    kc = jnp.repeat(-jnp.sum(centers * centers * A, axis=-1), O)    # (R*O,)
    p_flat = jnp.transpose(P, (1, 0, 2)).reshape(D, R * O)          # (D, R*O)
    w1_tiled = jnp.tile(w1, (R, 1))                                 # (R*O, H)

    w_slab = jnp.zeros((W_ROWS, LANES), jnp.float32)
    w_slab = w_slab.at[ROW_WA:ROW_WA + D, :].set(wa)
    w_slab = w_slab.at[ROW_WB:ROW_WB + D, :].set(wb)
    w_slab = w_slab.at[ROW_P:ROW_P + D, :].set(p_flat)
    w_slab = w_slab.at[ROW_W1:ROW_W1 + R * O, 0:H].set(w1_tiled)
    w_slab = w_slab.at[ROW_W2:ROW_W2 + H, 0:OUT].set(w2)

    b_slab = jnp.zeros((8, LANES), jnp.float32)
    b_slab = b_slab.at[0, :].set(kc)                    # fuzzification constant (-sum c^2 A)
    b_slab = b_slab.at[1, :].set(pb.reshape(-1))        # TSK consequent bias
    b_slab = b_slab.at[2, 0:H].set(b1)                  # head bias 1
    b_slab = b_slab.at[3, 0:OUT].set(b2)                # head bias 2

    xs = jnp.stack([x, s]).astype(jnp.float32)          # (2, B, D): one input DMA stream

    flops = 2 * batch * (3 * D * LANES + 2 * LANES * LANES)
    bytes_accessed = 4 * (xs.size + w_slab.size + b_slab.size + batch * LANES)

    out_wide = pl.pallas_call(
        anfis_net_kernel,
        out_shape=jax.ShapeDtypeStruct((batch, LANES), jnp.float32),
        grid=(batch // tb,),
        in_specs=[
            pl.BlockSpec((2, tb, D), lambda i: (0, i, 0)),     # stacked [x, s] tile
            pl.BlockSpec((W_ROWS, LANES), lambda i: (0, 0)),   # packed weight slab
            pl.BlockSpec((8, LANES), lambda i: (0, 0)),        # packed bias slab
        ],
        out_specs=pl.BlockSpec((tb, LANES), lambda i: (i, 0)), # lane-dense store
        compiler_params=pltpu.CompilerParams(
            dimension_semantics=("parallel",)),
        cost_estimate=pl.CostEstimate(
            flops=flops, transcendentals=batch * LANES,
            bytes_accessed=bytes_accessed),
    )(xs, w_slab, b_slab)
    return out_wide[:, :OUT]


def anfis_net_reference(x, centers, sigmas, P, pb, w1, b1, w2, b2, s=None):
    """Pure-JAX reference (HIGHEST-precision matmuls) for correctness checking."""
    if s is None:
        s = x
    hi = jax.lax.Precision.HIGHEST
    diff = x[:, None, :] - centers[None, :, :]                  # (B, R, D)
    logw = -jnp.sum(diff * diff / (2.0 * sigmas[None] ** 2), axis=-1)
    m = jnp.max(logw, axis=-1, keepdims=True)
    w = jnp.exp(logw - m)
    wn = w / jnp.sum(w, axis=-1, keepdims=True)
    f = jnp.einsum('bd,rdo->bro', s, P, precision=hi) + pb[None]
    y = jnp.sum(wn[:, :, None] * f, axis=1)
    h = jnp.maximum(jnp.dot(y, w1, precision=hi) + b1, 0.0)
    return jnp.dot(h, w2, precision=hi) + b2


if __name__ == "__main__":
    key = jax.random.PRNGKey(0)
    kx, kc_, ks_, kp, kpb, k1, k2 = jax.random.split(key, 7)

    # Example input (ANFISNet.forward(x) with s defaulting to x).
    B = 256
    x = jax.random.normal(kx, (B, D), jnp.float32)

    # Deterministic synthetic parameters (canonical Gaussian TSK ANFIS + MLP).
    centers = jax.random.normal(kc_, (R, D), jnp.float32)
    sigmas = 0.5 + jax.nn.softplus(jax.random.normal(ks_, (R, D), jnp.float32))
    P = 0.1 * jax.random.normal(kp, (R, D, O), jnp.float32)
    pb = 0.1 * jax.random.normal(kpb, (R, O), jnp.float32)
    w1 = 0.1 * jax.random.normal(k1, (O, H), jnp.float32)
    b1 = 0.05 * jnp.ones((H,), jnp.float32)
    w2 = 0.1 * jax.random.normal(k2, (H, OUT), jnp.float32)
    b2 = 0.02 * jnp.ones((OUT,), jnp.float32)

    out = anfis_net_forward(x, centers, sigmas, P, pb, w1, b1, w2, b2)
    out = jax.block_until_ready(out)
    assert out.shape == (B, OUT)

    ref = anfis_net_reference(x, centers, sigmas, P, pb, w1, b1, w2, b2)
    # Tolerance covers default-precision (bf16-pass) MXU matmuls on-device and
    # the expanded squared distance; a genuine layout/algebra bug would produce
    # O(0.1)-scale errors and still fail this check.
    assert jnp.allclose(out, ref, rtol=5e-3, atol=1e-3), "mismatch vs reference"

    # TODO(synk): the original ANFISNet wraps arbitrary `anfis`/`net` submodules;
    # this script fixes them to a canonical Gaussian TSK ANFIS + 2-layer MLP.
    print("KERNEL_OK")
</pallas_src>

<mosaic_0001>
module attributes {stable_mosaic.version = 11 : i64} {
  func.func @anfis_net_kernel(%arg0: i32, %arg1: memref<2x128x16xf32, #tpu.memory_space<vmem>>, %arg2: memref<304x128xf32, #tpu.memory_space<vmem>>, %arg3: memref<8x128xf32, #tpu.memory_space<vmem>>, %arg4: memref<128x128xf32, #tpu.memory_space<vmem>>) attributes {dimension_semantics = [#tpu.dimension_semantics<parallel>], iteration_bounds = array<i64: 2>, scalar_prefetch = 0 : i64, scratch_operands = 0 : i64, tpu.core_type = #tpu.core_type<tc>, window_params = [{transform_indices = @transform_0, window_bounds = array<i64: 2, 128, 16>}, {pipeline_mode = #tpu.pipeline_mode<synchronous>, transform_indices = @transform_1, window_bounds = array<i64: 304, 128>}, {pipeline_mode = #tpu.pipeline_mode<synchronous>, transform_indices = @transform_2, window_bounds = array<i64: 8, 128>}, {transform_indices = @transform_3, window_bounds = array<i64: 128, 128>}]} {
    %c0 = arith.constant 0 : index
    %c0_0 = arith.constant 0 : index
    %c0_1 = arith.constant 0 : index
    %0 = vector.load %arg1[%c0, %c0_0, %c0_1] : memref<2x128x16xf32, #tpu.memory_space<vmem>>, vector<1x128x16xf32>
    %1 = vector.shape_cast %0 : vector<1x128x16xf32> to vector<128x16xf32>
    %c1 = arith.constant 1 : index
    %c0_2 = arith.constant 0 : index
    %c0_3 = arith.constant 0 : index
    %2 = vector.load %arg1[%c1, %c0_2, %c0_3] : memref<2x128x16xf32, #tpu.memory_space<vmem>>, vector<1x128x16xf32>
    %3 = vector.shape_cast %2 : vector<1x128x16xf32> to vector<128x16xf32>
    %4 = arith.mulf %1, %1 : vector<128x16xf32>
    %c0_4 = arith.constant 0 : index
    %c0_5 = arith.constant 0 : index
    %5 = vector.load %arg2[%c0_4, %c0_5] : memref<304x128xf32, #tpu.memory_space<vmem>>, vector<16x128xf32>
    %cst = arith.constant dense<0.000000e+00> : vector<128x128xf32>
    %6 = tpu.matmul %4, %5, %cst {dimension_numbers = #tpu.dot_dimension_numbers<[1], [0], [0], [1], [0, 0, 1, 1], [], []>} : vector<128x16xf32>, vector<16x128xf32>, vector<128x128xf32> -> vector<128x128xf32>
    %c16 = arith.constant 16 : index
    %c0_6 = arith.constant 0 : index
    %7 = vector.load %arg2[%c16, %c0_6] : memref<304x128xf32, #tpu.memory_space<vmem>>, vector<16x128xf32>
    %cst_7 = arith.constant dense<0.000000e+00> : vector<128x128xf32>
    %8 = tpu.matmul %1, %7, %cst_7 {dimension_numbers = #tpu.dot_dimension_numbers<[1], [0], [0], [1], [0, 0, 1, 1], [], []>} : vector<128x16xf32>, vector<16x128xf32>, vector<128x128xf32> -> vector<128x128xf32>
    %9 = arith.addf %6, %8 : vector<128x128xf32>
    %c0_8 = arith.constant 0 : index
    %c0_9 = arith.constant 0 : index
    %10 = vector.load %arg3[%c0_8, %c0_9] : memref<8x128xf32, #tpu.memory_space<vmem>>, vector<1x128xf32>
    %11 = vector.broadcast %10 : vector<1x128xf32> to vector<128x128xf32>
    %12 = arith.addf %9, %11 : vector<128x128xf32>
    %cst_10 = arith.constant dense<0xFF800000> : vector<128xf32>
    %13 = vector.multi_reduction <maximumf>, %12, %cst_10 [1] : vector<128x128xf32> to vector<128xf32>
    %14 = vector.shape_cast %13 : vector<128xf32> to vector<128x1xf32>
    %15 = vector.broadcast %14 : vector<128x1xf32> to vector<128x128xf32>
    %16 = arith.subf %12, %15 : vector<128x128xf32>
    %17 = math.exp %16 : vector<128x128xf32>
    %cst_11 = arith.constant dense<0.000000e+00> : vector<128xf32>
    %18 = vector.multi_reduction <add>, %17, %cst_11 [1] : vector<128x128xf32> to vector<128xf32>
    %19 = vector.shape_cast %18 : vector<128xf32> to vector<128x1xf32>
    %c32 = arith.constant 32 : index
    %c0_12 = arith.constant 0 : index
    %20 = vector.load %arg2[%c32, %c0_12] : memref<304x128xf32, #tpu.memory_space<vmem>>, vector<16x128xf32>
    %cst_13 = arith.constant dense<0.000000e+00> : vector<128x128xf32>
    %21 = tpu.matmul %3, %20, %cst_13 {dimension_numbers = #tpu.dot_dimension_numbers<[1], [0], [0], [1], [0, 0, 1, 1], [], []>} : vector<128x16xf32>, vector<16x128xf32>, vector<128x128xf32> -> vector<128x128xf32>
    %c1_14 = arith.constant 1 : index
    %c0_15 = arith.constant 0 : index
    %22 = vector.load %arg3[%c1_14, %c0_15] : memref<8x128xf32, #tpu.memory_space<vmem>>, vector<1x128xf32>
    %23 = vector.broadcast %22 : vector<1x128xf32> to vector<128x128xf32>
    %24 = arith.addf %21, %23 : vector<128x128xf32>
    %25 = arith.mulf %17, %24 : vector<128x128xf32>
    %c48 = arith.constant 48 : index
    %c0_16 = arith.constant 0 : index
    %26 = vector.load %arg2[%c48, %c0_16] : memref<304x128xf32, #tpu.memory_space<vmem>>, vector<128x128xf32>
    %cst_17 = arith.constant dense<0.000000e+00> : vector<128x128xf32>
    %27 = tpu.matmul %25, %26, %cst_17 {dimension_numbers = #tpu.dot_dimension_numbers<[1], [0], [0], [1], [0, 0, 1, 1], [], []>} : vector<128x128xf32>, vector<128x128xf32>, vector<128x128xf32> -> vector<128x128xf32>
    %cst_18 = arith.constant 1.600000e+01 : f32
    %28 = vector.broadcast %cst_18 : f32 to vector<128x1xf32>
    %29 = arith.divf %28, %19 : vector<128x1xf32>
    %30 = vector.broadcast %29 : vector<128x1xf32> to vector<128x128xf32>
    %31 = arith.mulf %27, %30 : vector<128x128xf32>
    %c2 = arith.constant 2 : index
    %c0_19 = arith.constant 0 : index
    %32 = vector.load %arg3[%c2, %c0_19] : memref<8x128xf32, #tpu.memory_space<vmem>>, vector<1x128xf32>
    %33 = vector.broadcast %32 : vector<1x128xf32> to vector<128x128xf32>
    %34 = arith.addf %31, %33 : vector<128x128xf32>
    %cst_20 = arith.constant 0.000000e+00 : f32
    %35 = vector.broadcast %cst_20 : f32 to vector<128x128xf32>
    %36 = arith.maximumf %34, %35 : vector<128x128xf32>
    %c176 = arith.constant 176 : index
    %c0_21 = arith.constant 0 : index
    %37 = vector.load %arg2[%c176, %c0_21] : memref<304x128xf32, #tpu.memory_space<vmem>>, vector<128x128xf32>
    %cst_22 = arith.constant dense<0.000000e+00> : vector<128x128xf32>
    %38 = tpu.matmul %36, %37, %cst_22 {dimension_numbers = #tpu.dot_dimension_numbers<[1], [0], [0], [1], [0, 0, 1, 1], [], []>} : vector<128x128xf32>, vector<128x128xf32>, vector<128x128xf32> -> vector<128x128xf32>
    %c3 = arith.constant 3 : index
    %c0_23 = arith.constant 0 : index
    %39 = vector.load %arg3[%c3, %c0_23] : memref<8x128xf32, #tpu.memory_space<vmem>>, vector<1x128xf32>
    %40 = vector.broadcast %39 : vector<1x128xf32> to vector<128x128xf32>
    %41 = arith.addf %38, %40 : vector<128x128xf32>
    %c0_24 = arith.constant 0 : index
    %c0_25 = arith.constant 0 : index
    %42 = vector.load %arg4[%c0_24, %c0_25] : memref<128x128xf32, #tpu.memory_space<vmem>>, vector<128x128xf32>
    tpu.vector_store %arg4[%c0_24, %c0_25], %41 {strides = array<i32>} : memref<128x128xf32, #tpu.memory_space<vmem>>, vector<128x128xf32>,
    return
  }
  func.func @transform_0(%arg0: i32) -> (i32, i32, i32) {
    %c0_i32 = arith.constant 0 : i32
    %c0_i32_0 = arith.constant 0 : i32
    %c0_i32_1 = arith.constant 0 : i32
    return %c0_i32, %arg0, %c0_i32_0 : i32, i32, i32
  }
  func.func @transform_1(%arg0: i32) -> (i32, i32) {
    %c0_i32 = arith.constant 0 : i32
    %c0_i32_0 = arith.constant 0 : i32
    %c0_i32_1 = arith.constant 0 : i32
    return %c0_i32, %c0_i32_0 : i32, i32
  }
  func.func @transform_2(%arg0: i32) -> (i32, i32) {
    %c0_i32 = arith.constant 0 : i32
    %c0_i32_0 = arith.constant 0 : i32
    %c0_i32_1 = arith.constant 0 : i32
    return %c0_i32, %c0_i32_0 : i32, i32
  }
  func.func @transform_3(%arg0: i32) -> (i32, i32) {
    %c0_i32 = arith.constant 0 : i32
    %c0_i32_0 = arith.constant 0 : i32
    return %arg0, %c0_i32 : i32, i32
  }
}

</mosaic_0001>

<llo_original>
// kernel: tpu_custom_call.1
$region0: #{tpu_custom_call.1}
  #allocation0 [shape = 'u32[]', space=smem, size = 0x4, offset = 0x4, fixed_abs, tag = 'smem constant byte address 0x4 - core index']
  #allocation1 [shape = 'u32[144,128]{1,0:T(1,128)}', space=vmem, size = 0x12000, scoped, tag = 'internal scratch']
  %s0 = inlined_call_operand.vmem [shape: f32[2,256,16], index: 0, kind: input, shape index: {}]
  %s1 = inlined_call_operand.vmem [shape: f32[304,128], index: 1, kind: input, shape index: {}]
  %s2 = inlined_call_operand.vmem [shape: f32[8,128], index: 2, kind: input, shape index: {}]
  %s3 = inlined_call_operand.hbm [shape: f32[256,128], index: 3, kind: output, shape index: {}]
  %s4 = sld [smem:[#allocation0]]
  $region83: #{tpu_custom_call.1} parent=0
    _
  %s6 = ssub.s32 1, %s4
  %s7 = scalar_select 0, %s6, %s4
  $region1: #{tpu_custom_call.1} parent=0
    #allocation2 [shape = 'u8[262144]{0}', space=vmem, size = 0x40000, scoped, tag = 'input window, operand 0']
    #allocation3 [shape = 'u8[131072]{0}', space=vmem, size = 0x20000, scoped, tag = 'output window, operand 0']
    #allocation4 [shape = 's32[2]{0}', space=sflag, size = 0x8, scoped, tag = 'scoped memory for tpu_custom_call.1']
    %8 = vsyncpa [#allocation4], 0
    %s9 = scalar_lea.sflag [#allocation4], 1
    %10 = vsyncpa %s9, 0
    loop: start=0, step=1, limit=4
    $region2: #{tpu_custom_call.1} parent=1 // loop_pre_header
      _
    $region3: #{tpu_custom_call.1} parent=1 // loop_header
      %s12 = sphi 0, %s16
      %p13 = scmp.ge.s32.totalorder %s12, 4
      %s22 = sphi 0, %s24
      %s25 = sphi 0, %s22
      %s26 = sphi 0, %s25
      %s42 = sphi 0, %s26
      %s46 = sphi 0, %s46
      %s48 = sphi 0, %s46
      %s49 = sphi 0, %s48
      %s63 = sphi 0, %s49
      %s67 = sphi 0, %s67
      %s69 = sphi 0, %s67
      %s70 = sphi 0, %s69
      %s84 = sphi 0, %s70
      %s90 = sphi 0, %s92
      %s93 = sphi 0, %s90
      %s94 = sphi 0, %s93
      %s110 = sphi 0, %s94
    $region4: #{tpu_custom_call.1} parent=1 // loop_header_branch
      %15 = sbr.rel (%p13) target = $region8
    $region5: #{tpu_custom_call.1} parent=1 // loop_body
      %s17 = ssub.s32 %s12, 1
      %s18 = ssub.s32 %s12, 2
      %s19 = sadd.s32 %s12, 1
      %s20 = ssub.s32 %s12, %s19
      %p21 = scmp.eq.s32.totalorder %s20, 0
      %s23 = sadd.s32 %s22, 1
      %s24 = scalar_select %p21, %s22, %s23
      %p27 = pneg %p21
      %p28 = scmp.eq.s32.totalorder %s12, 1
      %p29 = por %p27, %p28
      %p30 = scmp.ne.s32.totalorder %s22, %s25
      %p31 = scmp.eq.s32.totalorder %s12, 0
      %p32 = por %p30, %p31
      %p33 = scmp.ne.s32.totalorder %s22, %s25
      %p34 = scmp.eq.s32.totalorder %s17, 1
      %p35 = por %p33, %p34
      %p36 = scmp.ne.s32.totalorder %s25, %s26
      %p37 = scmp.eq.s32.totalorder %s17, 0
      %p38 = por %p36, %p37
      %p39 = scmp.ne.s32.totalorder %s25, %s26
      %p40 = scmp.eq.s32.totalorder %s18, 1
      %p41 = por %p39, %p40
      %p43 = scmp.ne.s32.totalorder %s26, %s42
      %p44 = scmp.eq.s32.totalorder %s18, 0
      %p45 = por %p43, %p44
      %s47 = sadd.s32 %s46, 1
      %p50 = scmp.eq.s32.totalorder %s12, 1
      %p51 = scmp.ne.s32.totalorder %s46, %s48
      %p52 = scmp.eq.s32.totalorder %s12, 0
      %p53 = por %p51, %p52
      %p54 = scmp.ne.s32.totalorder %s46, %s48
      %p55 = scmp.eq.s32.totalorder %s17, 1
      %p56 = por %p54, %p55
      %p57 = scmp.ne.s32.totalorder %s48, %s49
      %p58 = scmp.eq.s32.totalorder %s17, 0
      %p59 = por %p57, %p58
      %p60 = scmp.ne.s32.totalorder %s48, %s49
      %p61 = scmp.eq.s32.totalorder %s18, 1
      %p62 = por %p60, %p61
      %p64 = scmp.ne.s32.totalorder %s49, %s63
      %p65 = scmp.eq.s32.totalorder %s18, 0
      %p66 = por %p64, %p65
      %s68 = sadd.s32 %s67, 1
      %p71 = scmp.eq.s32.totalorder %s12, 1
      %p72 = scmp.ne.s32.totalorder %s67, %s69
      %p73 = scmp.eq.s32.totalorder %s12, 0
      %p74 = por %p72, %p73
      %p75 = scmp.ne.s32.totalorder %s67, %s69
      %p76 = scmp.eq.s32.totalorder %s17, 1
      %p77 = por %p75, %p76
      %p78 = scmp.ne.s32.totalorder %s69, %s70
      %p79 = scmp.eq.s32.totalorder %s17, 0
      %p80 = por %p78, %p79
      %p81 = scmp.ne.s32.totalorder %s69, %s70
      %p82 = scmp.eq.s32.totalorder %s18, 1
      %p83 = por %p81, %p82
      %p85 = scmp.ne.s32.totalorder %s70, %s84
      %p86 = scmp.eq.s32.totalorder %s18, 0
      %p87 = por %p85, %p86
      %s88 = ssub.s32 %s12, %s19
      %p89 = scmp.eq.s32.totalorder %s88, 0
      %s91 = sadd.s32 %s90, 1
      %s92 = scalar_select %p89, %s90, %s91
      %p95 = pneg %p89
      %p96 = scmp.eq.s32.totalorder %s12, 1
      %p97 = por %p95, %p96
      %p98 = scmp.ne.s32.totalorder %s90, %s93
      %p99 = scmp.eq.s32.totalorder %s12, 0
      %p100 = por %p98, %p99
      %p101 = scmp.ne.s32.totalorder %s90, %s93
      %p102 = scmp.eq.s32.totalorder %s17, 1
      %p103 = por %p101, %p102
      %p104 = scmp.ne.s32.totalorder %s93, %s94
      %p105 = scmp.eq.s32.totalorder %s17, 0
      %p106 = por %p104, %p105
      %p107 = scmp.ne.s32.totalorder %s93, %s94
      %p108 = scmp.eq.s32.totalorder %s18, 1
      %p109 = por %p107, %p108
      %p111 = scmp.ne.s32.totalorder %s94, %s110
      %p112 = scmp.eq.s32.totalorder %s18, 0
      %p113 = por %p111, %p112
      %p114 = scmp.le.s32.totalorder 1, %s12
      %p115 = scmp.lt.s32.totalorder %s12, 3
      %p116 = pnand %p114, %p115
      %p117 = pneg %p116
      // Predicated region
      $region9: #{tpu_custom_call.1} parent=5 // pred_check
        _
      $region10: #{tpu_custom_call.1} parent=5 // pred_check_branch
        %119 = sbr.rel (%p116) target = $region12
      $region11: #{tpu_custom_call.1} parent=5 // pred_region
        %s120 = ssub.s32 %s12, 1
        // Predicated region
        $region13: #{tpu_custom_call.1} parent=11 // pred_check
          %p121 = pneg %p59
        $region14: #{tpu_custom_call.1} parent=11 // pred_check_branch
          %123 = sbr.rel (%p121) target = $region16
        $region15: #{tpu_custom_call.1} parent=11 // pred_region
          _
        $region16: #{tpu_custom_call.1} parent=11 // pred_fallthru
          _
        // Predicated region
        $region17: #{tpu_custom_call.1} parent=11 // pred_check
          %p124 = pneg %p80
        $region18: #{tpu_custom_call.1} parent=11 // pred_check_branch
          %126 = sbr.rel (%p124) target = $region20
        $region19: #{tpu_custom_call.1} parent=11 // pred_region
          _
        $region20: #{tpu_custom_call.1} parent=11 // pred_fallthru
          _
      $region12: #{tpu_custom_call.1} parent=5 // pred_fallthru
        _
      %p127 = scmp.lt.s32.totalorder %s12, 2
      // Predicated region
      $region21: #{tpu_custom_call.1} parent=5 // pred_check
        %p128 = pneg %p127
      $region22: #{tpu_custom_call.1} parent=5 // pred_check_branch
        %130 = sbr.rel (%p128) target = $region24
      $region23: #{tpu_custom_call.1} parent=5 // pred_region
        // Predicated region
        $region25: #{tpu_custom_call.1} parent=23 // pred_check
          %p131 = pneg %p32
        $region26: #{tpu_custom_call.1} parent=23 // pred_check_branch
          %133 = sbr.rel (%p131) target = $region28
        $region27: #{tpu_custom_call.1} parent=23 // pred_region
          %s134 = sand.u32 %s22, 1
          %s135 = sand.u32 %s22, 1
          %s136 = smul.addr %s135, 256
          %s137 = scalar_lea.vmem [#allocation2], %s136
          %s138 = smul.u32 16, %s12
          %s139 = smul.addr %s138, 8
          %s140 = scalar_lea.vmem %s0, %s139
          // Predicated region
          $region29: #{tpu_custom_call.1} parent=27 // pred_check
            _
          $region30: #{tpu_custom_call.1} parent=27 // pred_check_branch
            %142 = sbr.rel (0) target = $region32
          $region31: #{tpu_custom_call.1} parent=27 // pred_region
            // Predicated region
            $region33: #{tpu_custom_call.1} parent=31 // pred_check
              _
            $region34: #{tpu_custom_call.1} parent=31 // pred_check_branch
              %144 = sbr.rel (0) target = $region36
            $region35: #{tpu_custom_call.1} parent=31 // pred_region
              // Predicated region
              $region48: #{tpu_custom_call.1} parent=35 // pred_check
                _
              $region49: #{tpu_custom_call.1} parent=35 // pred_check_branch
                %221 = sbr.rel (0) target = $region51
              $region50: #{tpu_custom_call.1} parent=35 // pred_region
                loop: start=0, step=1, limit=1
                $region52: #{tpu_custom_call.1} parent=50 // loop_pre_header
                  _
                $region53: #{tpu_custom_call.1} parent=50 // loop_header
                  %s223 = sphi 0, %s227
                  %p224 = scmp.ge.s32.totalorder %s223, 1
                  %s228 = sphi %s140, %s140
                  %s229 = sphi %s137, %s137
                $region54: #{tpu_custom_call.1} parent=50 // loop_header_branch
                  %226 = sbr.rel (%p224) target = $region58
                $region55: #{tpu_custom_call.1} parent=50 // loop_body
                  %v230 = vld [vmem:[%s228] sm:$0xff]
                  %231 = vst [vmem:[%s229] sm:$0xff] %v230
                  %v232 = vld [vmem:[%s228 + $0x8] sm:$0xff]
                  %233 = vst [vmem:[%s229 + $0x8] sm:$0xff] %v232
                  %v234 = vld [vmem:[%s228 + $0x10] sm:$0xff]
                  %235 = vst [vmem:[%s229 + $0x10] sm:$0xff] %v234
                  %v236 = vld [vmem:[%s228 + $0x18] sm:$0xff]
                  %237 = vst [vmem:[%s229 + $0x18] sm:$0xff] %v236
                  %v238 = vld [vmem:[%s228 + $0x20] sm:$0xff]
                  %239 = vst [vmem:[%s229 + $0x20] sm:$0xff] %v238
                  %v240 = vld [vmem:[%s228 + $0x28] sm:$0xff]
                  %241 = vst [vmem:[%s229 + $0x28] sm:$0xff] %v240
                  %v242 = vld [vmem:[%s228 + $0x30] sm:$0xff]
                  %243 = vst [vmem:[%s229 + $0x30] sm:$0xff] %v242
                  %v244 = vld [vmem:[%s228 + $0x38] sm:$0xff]
                  %245 = vst [vmem:[%s229 + $0x38] sm:$0xff] %v244
                  %v246 = vld [vmem:[%s228 + $0x40] sm:$0xff]
                  %247 = vst [vmem:[%s229 + $0x40] sm:$0xff] %v246
                  %v248 = vld [vmem:[%s228 + $0x48] sm:$0xff]
                  %249 = vst [vmem:[%s229 + $0x48] sm:$0xff] %v248
                  %v250 = vld [vmem:[%s228 + $0x50] sm:$0xff]
                  %251 = vst [vmem:[%s229 + $0x50] sm:$0xff] %v250
                  %v252 = vld [vmem:[%s228 + $0x58] sm:$0xff]
                  %253 = vst [vmem:[%s229 + $0x58] sm:$0xff] %v252
                  %v254 = vld [vmem:[%s228 + $0x60] sm:$0xff]
                  %255 = vst [vmem:[%s229 + $0x60] sm:$0xff] %v254
                  %v256 = vld [vmem:[%s228 + $0x68] sm:$0xff]
                  %257 = vst [vmem:[%s229 + $0x68] sm:$0xff] %v256
                  %v258 = vld [vmem:[%s228 + $0x70] sm:$0xff]
                  %259 = vst [vmem:[%s229 + $0x70] sm:$0xff] %v258
                  %v260 = vld [vmem:[%s228 + $0x78] sm:$0xff]
                  %261 = vst [vmem:[%s229 + $0x78] sm:$0xff] %v260
                  %v262 = vld [vmem:[%s228 + $0x100] sm:$0xff]
                  %263 = vst [vmem:[%s229 + $0x80] sm:$0xff] %v262
                  %v264 = vld [vmem:[%s228 + $0x108] sm:$0xff]
                  %265 = vst [vmem:[%s229 + $0x88] sm:$0xff] %v264
                  %v266 = vld [vmem:[%s228 + $0x110] sm:$0xff]
                  %267 = vst [vmem:[%s229 + $0x90] sm:$0xff] %v266
                  %v268 = vld [vmem:[%s228 + $0x118] sm:$0xff]
                  %269 = vst [vmem:[%s229 + $0x98] sm:$0xff] %v268
                  %v270 = vld [vmem:[%s228 + $0x120] sm:$0xff]
                  %271 = vst [vmem:[%s229 + $0xa0] sm:$0xff] %v270
                  %v272 = vld [vmem:[%s228 + $0x128] sm:$0xff]
                  %273 = vst [vmem:[%s229 + $0xa8] sm:$0xff] %v272
                  %v274 = vld [vmem:[%s228 + $0x130] sm:$0xff]
                  %275 = vst [vmem:[%s229 + $0xb0] sm:$0xff] %v274
                  %v276 = vld [vmem:[%s228 + $0x138] sm:$0xff]
                  %277 = vst [vmem:[%s229 + $0xb8] sm:$0xff] %v276
                  %v278 = vld [vmem:[%s228 + $0x140] sm:$0xff]
                  %279 = vst [vmem:[%s229 + $0xc0] sm:$0xff] %v278
                  %v280 = vld [vmem:[%s228 + $0x148] sm:$0xff]
                  %281 = vst [vmem:[%s229 + $0xc8] sm:$0xff] %v280
                  %v282 = vld [vmem:[%s228 + $0x150] sm:$0xff]
                  %283 = vst [vmem:[%s229 + $0xd0] sm:$0xff] %v282
                  %v284 = vld [vmem:[%s228 + $0x158] sm:$0xff]
                  %285 = vst [vmem:[%s229 + $0xd8] sm:$0xff] %v284
                  %v286 = vld [vmem:[%s228 + $0x160] sm:$0xff]
                  %287 = vst [vmem:[%s229 + $0xe0] sm:$0xff] %v286
                  %v288 = vld [vmem:[%s228 + $0x168] sm:$0xff]
                  %289 = vst [vmem:[%s229 + $0xe8] sm:$0xff] %v288
                  %v290 = vld [vmem:[%s228 + $0x170] sm:$0xff]
                  %291 = vst [vmem:[%s229 + $0xf0] sm:$0xff] %v290
                  %v292 = vld [vmem:[%s228 + $0x178] sm:$0xff]
                  %293 = vst [vmem:[%s229 + $0xf8] sm:$0xff] %v292
                $region56: #{tpu_custom_call.1} parent=50 // loop_footer
                  %s227 = sadd.s32 1, %s223
                $region57: #{tpu_custom_call.1} parent=50 // loop_footer_branch
                  %222 = sbr.rel target = $region53
                $region58: #{tpu_custom_call.1} parent=50 // loop_exit
                  _
              $region51: #{tpu_custom_call.1} parent=35 // pred_fallthru
                _
              // Predicated region
              $region59: #{tpu_custom_call.1} parent=35 // pred_check
                _
              $region60: #{tpu_custom_call.1} parent=35 // pred_check_branch
                %295 = sbr.rel target = $region62
              $region61: #{tpu_custom_call.1} parent=35 // pred_region
                _
              $region62: #{tpu_custom_call.1} parent=35 // pred_fallthru
                _
            $region36: #{tpu_custom_call.1} parent=31 // pred_fallthru
              _
            // Predicated region
            $region37: #{tpu_custom_call.1} parent=31 // pred_check
              _
            $region38: #{tpu_custom_call.1} parent=31 // pred_check_branch
              %146 = sbr.rel target = $region40
            $region39: #{tpu_custom_call.1} parent=31 // pred_region
              loop: start=0, step=1, limit=1
              $region41: #{tpu_custom_call.1} parent=39 // loop_pre_header
                _
              $region42: #{tpu_custom_call.1} parent=39 // loop_header
                %s149 = sphi 0, %s153
                %p150 = scmp.ge.s32.totalorder %s149, 1
                %s154 = sphi %s140, %s140
                %s155 = sphi %s137, %s137
              $region43: #{tpu_custom_call.1} parent=39 // loop_header_branch
                %152 = sbr.rel (%p150) target = $region47
              $region44: #{tpu_custom_call.1} parent=39 // loop_body
                %v156 = vld [vmem:[%s154] sm:$0xff]
                %157 = vst [vmem:[%s155] sm:$0xff] %v156
                %v158 = vld [vmem:[%s154 + $0x8] sm:$0xff]
                %159 = vst [vmem:[%s155 + $0x8] sm:$0xff] %v158
                %v160 = vld [vmem:[%s154 + $0x10] sm:$0xff]
                %161 = vst [vmem:[%s155 + $0x10] sm:$0xff] %v160
                %v162 = vld [vmem:[%s154 + $0x18] sm:$0xff]
                %163 = vst [vmem:[%s155 + $0x18] sm:$0xff] %v162
                %v164 = vld [vmem:[%s154 + $0x20] sm:$0xff]
                %165 = vst [vmem:[%s155 + $0x20] sm:$0xff] %v164
                %v166 = vld [vmem:[%s154 + $0x28] sm:$0xff]
                %167 = vst [vmem:[%s155 + $0x28] sm:$0xff] %v166
                %v168 = vld [vmem:[%s154 + $0x30] sm:$0xff]
                %169 = vst [vmem:[%s155 + $0x30] sm:$0xff] %v168
                %v170 = vld [vmem:[%s154 + $0x38] sm:$0xff]
                %171 = vst [vmem:[%s155 + $0x38] sm:$0xff] %v170
                %v172 = vld [vmem:[%s154 + $0x40] sm:$0xff]
                %173 = vst [vmem:[%s155 + $0x40] sm:$0xff] %v172
                %v174 = vld [vmem:[%s154 + $0x48] sm:$0xff]
                %175 = vst [vmem:[%s155 + $0x48] sm:$0xff] %v174
                %v176 = vld [vmem:[%s154 + $0x50] sm:$0xff]
                %177 = vst [vmem:[%s155 + $0x50] sm:$0xff] %v176
                %v178 = vld [vmem:[%s154 + $0x58] sm:$0xff]
                %179 = vst [vmem:[%s155 + $0x58] sm:$0xff] %v178
                %v180 = vld [vmem:[%s154 + $0x60] sm:$0xff]
                %181 = vst [vmem:[%s155 + $0x60] sm:$0xff] %v180
                %v182 = vld [vmem:[%s154 + $0x68] sm:$0xff]
                %183 = vst [vmem:[%s155 + $0x68] sm:$0xff] %v182
                %v184 = vld [vmem:[%s154 + $0x70] sm:$0xff]
                %185 = vst [vmem:[%s155 + $0x70] sm:$0xff] %v184
                %v186 = vld [vmem:[%s154 + $0x78] sm:$0xff]
                %187 = vst [vmem:[%s155 + $0x78] sm:$0xff] %v186
                %v188 = vld [vmem:[%s154 + $0x100] sm:$0xff]
                %189 = vst [vmem:[%s155 + $0x80] sm:$0xff] %v188
                %v190 = vld [vmem:[%s154 + $0x108] sm:$0xff]
                %191 = vst [vmem:[%s155 + $0x88] sm:$0xff] %v190
                %v192 = vld [vmem:[%s154 + $0x110] sm:$0xff]
                %193 = vst [vmem:[%s155 + $0x90] sm:$0xff] %v192
                %v194 = vld [vmem:[%s154 + $0x118] sm:$0xff]
                %195 = vst [vmem:[%s155 + $0x98] sm:$0xff] %v194
                %v196 = vld [vmem:[%s154 + $0x120] sm:$0xff]
                %197 = vst [vmem:[%s155 + $0xa0] sm:$0xff] %v196
                %v198 = vld [vmem:[%s154 + $0x128] sm:$0xff]
                %199 = vst [vmem:[%s155 + $0xa8] sm:$0xff] %v198
                %v200 = vld [vmem:[%s154 + $0x130] sm:$0xff]
                %201 = vst [vmem:[%s155 + $0xb0] sm:$0xff] %v200
                %v202 = vld [vmem:[%s154 + $0x138] sm:$0xff]
                %203 = vst [vmem:[%s155 + $0xb8] sm:$0xff] %v202
                %v204 = vld [vmem:[%s154 + $0x140] sm:$0xff]
                %205 = vst [vmem:[%s155 + $0xc0] sm:$0xff] %v204
                %v206 = vld [vmem:[%s154 + $0x148] sm:$0xff]
                %207 = vst [vmem:[%s155 + $0xc8] sm:$0xff] %v206
                %v208 = vld [vmem:[%s154 + $0x150] sm:$0xff]
                %209 = vst [vmem:[%s155 + $0xd0] sm:$0xff] %v208
                %v210 = vld [vmem:[%s154 + $0x158] sm:$0xff]
                %211 = vst [vmem:[%s155 + $0xd8] sm:$0xff] %v210
                %v212 = vld [vmem:[%s154 + $0x160] sm:$0xff]
                %213 = vst [vmem:[%s155 + $0xe0] sm:$0xff] %v212
                %v214 = vld [vmem:[%s154 + $0x168] sm:$0xff]
                %215 = vst [vmem:[%s155 + $0xe8] sm:$0xff] %v214
                %v216 = vld [vmem:[%s154 + $0x170] sm:$0xff]
                %217 = vst [vmem:[%s155 + $0xf0] sm:$0xff] %v216
                %v218 = vld [vmem:[%s154 + $0x178] sm:$0xff]
                %219 = vst [vmem:[%s155 + $0xf8] sm:$0xff] %v218
              $region45: #{tpu_custom_call.1} parent=39 // loop_footer
                %s153 = sadd.s32 1, %s149
              $region46: #{tpu_custom_call.1} parent=39 // loop_footer_branch
                %148 = sbr.rel target = $region42
              $region47: #{tpu_custom_call.1} parent=39 // loop_exit
                _
            $region40: #{tpu_custom_call.1} parent=31 // pred_fallthru
              _
          $region32: #{tpu_custom_call.1} parent=27 // pred_fallthru
            _
          %296 = vnop
        $region28: #{tpu_custom_call.1} parent=23 // pred_fallthru
          _
      $region24: #{tpu_custom_call.1} parent=5 // pred_fallthru
        _
      %p297 = scmp.le.s32.totalorder 1, %s12
      %p298 = scmp.lt.s32.totalorder %s12, 3
      %p299 = pnand %p297, %p298
      %p300 = pneg %p299
      // Predicated region
      $region63: #{tpu_custom_call.1} parent=5 // pred_check
        _
      $region64: #{tpu_custom_call.1} parent=5 // pred_check_branch
        %302 = sbr.rel (%p299) target = $region66
      $region65: #{tpu_custom_call.1} parent=5 // pred_region
        %s303 = ssub.s32 %s12, 1
        %s304 = sand.u32 %s25, 1
        %s305 = sand.u32 %s25, 1
        %s306 = smul.addr %s305, 256
        %s307 = scalar_lea.vmem [#allocation2], %s306
        // Predicated region
        $region67: #{tpu_custom_call.1} parent=65 // pred_check
          %p308 = pneg %p38
        $region68: #{tpu_custom_call.1} parent=65 // pred_check_branch
          %310 = sbr.rel (%p308) target = $region70
        $region69: #{tpu_custom_call.1} parent=65 // pred_region
          _
        $region70: #{tpu_custom_call.1} parent=65 // pred_fallthru
          _
        %s311 = sand.u32 %s25, 1
        %s312 = sand.u32 %s25, 1
        %s313 = smul.addr %s312, 256
        %s314 = scalar_lea.vmem [#allocation2], %s313
        %p315 = pneg %p38
        %p316 = pneg %p35
        %p317 = pneg %p59
        %p318 = pneg %p56
        %p319 = pneg %p80
        %p320 = pneg %p77
        %p321 = pneg %p106
        %p322 = pneg %p103
        %s323 = sand.u32 %s93, 1
        %s324 = scalar_lea.sflag [#allocation4], %s323
        %s325 = sand.u32 %s93, 1
        %s326 = smul.addr %s325, 128
        %s327 = scalar_lea.vmem [#allocation3], %s326
        %s328 = smul.u32 16, %s17
        %s329 = smul.u32 16, %s17
        %v330 = vld [vmem:[%s307] sm:$0xff]
        %v331 = vld [vmem:[%s307 + $0x8] sm:$0xff]
        %v332 = vld [vmem:[%s307 + $0x10] sm:$0xff]
        %v333 = vld [vmem:[%s307 + $0x18] sm:$0xff]
        %v334 = vld [vmem:[%s307 + $0x20] sm:$0xff]
        %v335 = vld [vmem:[%s307 + $0x28] sm:$0xff]
        %v336 = vld [vmem:[%s307 + $0x30] sm:$0xff]
        %v337 = vld [vmem:[%s307 + $0x38] sm:$0xff]
        %v338 = vld [vmem:[%s307 + $0x40] sm:$0xff]
        %v339 = vld [vmem:[%s307 + $0x48] sm:$0xff]
        %v340 = vld [vmem:[%s307 + $0x50] sm:$0xff]
        %v341 = vld [vmem:[%s307 + $0x58] sm:$0xff]
        %v342 = vld [vmem:[%s307 + $0x60] sm:$0xff]
        %v343 = vld [vmem:[%s307 + $0x68] sm:$0xff]
        %v344 = vld [vmem:[%s307 + $0x70] sm:$0xff]
        %v345 = vld [vmem:[%s307 + $0x78] sm:$0xff]
        %s346 = scalar_lea.vmem %s307, 128 [#allocation2]
        %v347 = vld [vmem:[%s346] sm:$0xff]
        %v348 = vld [vmem:[%s346 + $0x8] sm:$0xff]
        %v349 = vld [vmem:[%s346 + $0x10] sm:$0xff]
        %v350 = vld [vmem:[%s346 + $0x18] sm:$0xff]
        %v351 = vld [vmem:[%s346 + $0x20] sm:$0xff]
        %v352 = vld [vmem:[%s346 + $0x28] sm:$0xff]
        %v353 = vld [vmem:[%s346 + $0x30] sm:$0xff]
        %v354 = vld [vmem:[%s346 + $0x38] sm:$0xff]
        %v355 = vld [vmem:[%s346 + $0x40] sm:$0xff]
        %v356 = vld [vmem:[%s346 + $0x48] sm:$0xff]
        %v357 = vld [vmem:[%s346 + $0x50] sm:$0xff]
        %v358 = vld [vmem:[%s346 + $0x58] sm:$0xff]
        %v359 = vld [vmem:[%s346 + $0x60] sm:$0xff]
        %v360 = vld [vmem:[%s346 + $0x68] sm:$0xff]
        %v361 = vld [vmem:[%s346 + $0x70] sm:$0xff]
        %v362 = vld [vmem:[%s346 + $0x78] sm:$0xff]
        %v363 = vmul.f32 %v330, %v330
        %v364 = vmul.f32 %v331, %v331
        %v365 = vmul.f32 %v332, %v332
        %v366 = vmul.f32 %v333, %v333
        %v367 = vmul.f32 %v334, %v334
        %v368 = vmul.f32 %v335, %v335
        %v369 = vmul.f32 %v336, %v336
        %v370 = vmul.f32 %v337, %v337
        %v371 = vmul.f32 %v338, %v338
        %v372 = vmul.f32 %v339, %v339
        %v373 = vmul.f32 %v340, %v340
        %v374 = vmul.f32 %v341, %v341
        %v375 = vmul.f32 %v342, %v342
        %v376 = vmul.f32 %v343, %v343
        %v377 = vmul.f32 %v344, %v344
        %v378 = vmul.f32 %v345, %v345
        %v379 = vld [vmem:[%s1] sm:$0xff]
        %v380 = vld [vmem:[%s1 + $0x8] sm:$0xff]
        %v381 = vld [vmem:[%s1 + $0x10] sm:$0xff]
        %v382 = vld [vmem:[%s1 + $0x18] sm:$0xff]
        %vm383 = vcmask 130048
        %v385 = vsel %vm383, %v330, 0
        %v388 = vsel %vm383, %v331, 0
        %v391 = vsel %vm383, %v332, 0
        %v394 = vsel %vm383, %v333, 0
        %v397 = vsel %vm383, %v334, 0
        %v400 = vsel %vm383, %v335, 0
        %v403 = vsel %vm383, %v336, 0
        %v406 = vsel %vm383, %v337, 0
        %v409 = vsel %vm383, %v338, 0
        %v412 = vsel %vm383, %v339, 0
        %v415 = vsel %vm383, %v340, 0
        %v418 = vsel %vm383, %v341, 0
        %v421 = vsel %vm383, %v342, 0
        %v424 = vsel %vm383, %v343, 0
        %v427 = vsel %vm383, %v344, 0
        %v430 = vsel %vm383, %v345, 0
        %432 = vmatprep.subr.mxu0 0.0
        %433 = vmatpush1.msra.mxu0 %v381
        %434 = vmatprep.subr.mxu0 0.0
        %435 = vmatpush1.msra.mxu0 %v382
        %436 = vmatprep.subr.mxu0 0.0
        %437 = vmatpush1.msra.mxu0 0.0
        %438 = vmatprep.subr.mxu0 0.0
        %439 = vmatpush1.msra.mxu0 0.0
        %440 = vmatprep.subr.mxu0 0.0
        %441 = vmatpush1.msra.mxu0 0.0
        %442 = vmatprep.subr.mxu0 0.0
        %443 = vmatpush1.msra.mxu0 0.0
        %444 = vmatprep.subr.mxu0 0.0
        %445 = vmatpush1.msra.mxu0 0.0
        %446 = vmatprep.subr.mxu0 0.0
        %447 = vmatpush1.msra.mxu0 0.0
        %448 = vmatprep.subr.mxu0 0.0
        %449 = vmatpush1.msra.mxu0 0.0
        %450 = vmatprep.subr.mxu0 0.0
        %451 = vmatpush1.msra.mxu0 0.0
        %452 = vmatprep.subr.mxu0 0.0
        %453 = vmatpush1.msra.mxu0 0.0
        %454 = vmatprep.subr.mxu0 0.0
        %455 = vmatpush1.msra.mxu0 0.0
        %456 = vmatprep.subr.mxu0 0.0
        %457 = vmatpush1.msra.mxu0 0.0
        %458 = vmatprep.subr.mxu0 0.0
        %459 = vmatpush1.msra.mxu0 0.0
        %460 = vmatprep.subr.mxu0 0.0
        %461 = vmatpush1.msra.mxu0 0.0
        %462 = vmatprep.subr.mxu0 0.0
        %463 = vmatpush1.msra.mxu0 0.0
        %464 = vmatprep.subr.mxu0 0.0
        %465 = vmatpush1.msra.mxu0 0.0
        %466 = vmatprep.subr.mxu0 0.0
        %467 = vmatpush1.msra.mxu0 0.0
        %468 = vmatprep.subr.mxu0 0.0
        %469 = vmatpush1.msra.mxu0 0.0
        %470 = vmatprep.subr.mxu0 0.0
        %471 = vmatpush1.msra.mxu0 0.0
        %472 = vmatprep.subr.mxu0 0.0
        %473 = vmatpush1.msra.mxu0 0.0
        %474 = vmatprep.subr.mxu0 0.0
        %475 = vmatpush1.msra.mxu0 0.0
        %476 = vmatprep.subr.mxu0 0.0
        %477 = vmatpush1.msra.mxu0 0.0
        %478 = vmatprep.subr.mxu0 0.0
        %479 = vmatpush1.msra.mxu0 0.0
        %480 = vmatprep.subr.mxu0 0.0
        %481 = vmatpush1.msra.mxu0 0.0
        %482 = vmatprep.subr.mxu0 0.0
        %483 = vmatpush1.msra.mxu0 0.0
        %484 = vmatprep.subr.mxu0 0.0
        %485 = vmatpush1.msra.mxu0 0.0
        %486 = vmatprep.subr.mxu0 0.0
        %487 = vmatpush1.msra.mxu0 0.0
        %488 = vmatprep.subr.mxu0 0.0
        %489 = vmatpush1.msra.mxu0 0.0
        %490 = vmatprep.subr.mxu0 0.0
        %491 = vmatpush1.msra.mxu0 0.0
        %492 = vmatprep.subr.mxu0 0.0
        %493 = vmatpush1.msra.mxu0 0.0
        %494 = vmatprep.subr.mxu0 0.0
        %495 = vmatpush1.msra.mxu0 0.0
        %496 = vmatprep.mubr.f32.mxu0 0.0
        %497 = vmatmul.mubr.f32.gmra.mrb[0].mxu0 %v385
        %v498 = vpop.f32.mrb[0].mxu0
        %v499 = vadd.f32 0.0, %v498
        %v500 = vpop.f32.mrb[0].mxu0
        %501 = vmatprep.mubr.f32.mxu0 0.0
        %502 = vmatmul.mubr.f32.gmra.mrb[0].mxu0 %v388
        %v503 = vpop.f32.mrb[0].mxu0
        %v504 = vadd.f32 0.0, %v503
        %v505 = vpop.f32.mrb[0].mxu0
        %506 = vmatprep.mubr.f32.mxu0 0.0
        %507 = vmatmul.mubr.f32.gmra.mrb[0].mxu0 %v391
        %v508 = vpop.f32.mrb[0].mxu0
        %v509 = vadd.f32 0.0, %v508
        %v510 = vpop.f32.mrb[0].mxu0
        %511 = vmatprep.mubr.f32.mxu0 0.0
        %512 = vmatmul.mubr.f32.gmra.mrb[0].mxu0 %v394
        %v513 = vpop.f32.mrb[0].mxu0
        %v514 = vadd.f32 0.0, %v513
        %v515 = vpop.f32.mrb[0].mxu0
        %516 = vmatprep.mubr.f32.mxu0 0.0
        %517 = vmatmul.mubr.f32.gmra.mrb[0].mxu0 %v397
        %v518 = vpop.f32.mrb[0].mxu0
        %v519 = vadd.f32 0.0, %v518
        %v520 = vpop.f32.mrb[0].mxu0
        %521 = vmatprep.mubr.f32.mxu0 0.0
        %522 = vmatmul.mubr.f32.gmra.mrb[0].mxu0 %v400
        %v523 = vpop.f32.mrb[0].mxu0
        %v524 = vadd.f32 0.0, %v523
        %v525 = vpop.f32.mrb[0].mxu0
        %526 = vmatprep.mubr.f32.mxu0 0.0
        %527 = vmatmul.mubr.f32.gmra.mrb[0].mxu0 %v403
        %v528 = vpop.f32.mrb[0].mxu0
        %v529 = vadd.f32 0.0, %v528
        %v530 = vpop.f32.mrb[0].mxu0
        %531 = vmatprep.mubr.f32.mxu0 0.0
        %532 = vmatmul.mubr.f32.gmra.mrb[0].mxu0 %v406
        %v533 = vpop.f32.mrb[0].mxu0
        %v534 = vadd.f32 0.0, %v533
        %v535 = vpop.f32.mrb[0].mxu0
        %536 = vmatprep.mubr.f32.mxu0 0.0
        %537 = vmatmul.mubr.f32.gmra.mrb[0].mxu0 %v409
        %v538 = vpop.f32.mrb[0].mxu0
        %v539 = vadd.f32 0.0, %v538
        %v540 = vpop.f32.mrb[0].mxu0
        %541 = vmatprep.mubr.f32.mxu0 0.0
        %542 = vmatmul.mubr.f32.gmra.mrb[0].mxu0 %v412
        %v543 = vpop.f32.mrb[0].mxu0
        %v544 = vadd.f32 0.0, %v543
        %v545 = vpop.f32.mrb[0].mxu0
        %546 = vmatprep.mubr.f32.mxu0 0.0
        %547 = vmatmul.mubr.f32.gmra.mrb[0].mxu0 %v415
        %v548 = vpop.f32.mrb[0].mxu0
        %v549 = vadd.f32 0.0, %v548
        %v550 = vpop.f32.mrb[0].mxu0
        %551 = vmatprep.mubr.f32.mxu0 0.0
        %552 = vmatmul.mubr.f32.gmra.mrb[0].mxu0 %v418
        %v553 = vpop.f32.mrb[0].mxu0
        %v554 = vadd.f32 0.0, %v553
        %v555 = vpop.f32.mrb[0].mxu0
        %556 = vmatprep.mubr.f32.mxu0 0.0
        %557 = vmatmul.mubr.f32.gmra.mrb[0].mxu0 %v421
        %v558 = vpop.f32.mrb[0].mxu0
        %v559 = vadd.f32 0.0, %v558
        %v560 = vpop.f32.mrb[0].mxu0
        %561 = vmatprep.mubr.f32.mxu0 0.0
        %562 = vmatmul.mubr.f32.gmra.mrb[0].mxu0 %v424
        %v563 = vpop.f32.mrb[0].mxu0
        %v564 = vadd.f32 0.0, %v563
        %v565 = vpop.f32.mrb[0].mxu0
        %566 = vmatprep.mubr.f32.mxu0 0.0
        %567 = vmatmul.mubr.f32.gmra.mrb[0].mxu0 %v427
        %v568 = vpop.f32.mrb[0].mxu0
        %v569 = vadd.f32 0.0, %v568
        %v570 = vpop.f32.mrb[0].mxu0
        %571 = vmatprep.mubr.f32.mxu0 0.0
        %572 = vmatmul.mubr.f32.gmra.mrb[0].mxu0 %v430
        %v573 = vpop.f32.mrb[0].mxu0
        %v574 = vadd.f32 0.0, %v573
        %v575 = vpop.f32.mrb[0].mxu0
        %576 = vdwg.mxu0
        %v578 = vsel %vm383, %v363, 0
        %v581 = vsel %vm383, %v364, 0
        %v584 = vsel %vm383, %v365, 0
        %v587 = vsel %vm383, %v366, 0
        %v590 = vsel %vm383, %v367, 0
        %v593 = vsel %vm383, %v368, 0
        %v596 = vsel %vm383, %v369, 0
        %v599 = vsel %vm383, %v370, 0
        %v602 = vsel %vm383, %v371, 0
        %v605 = vsel %vm383, %v372, 0
        %v608 = vsel %vm383, %v373, 0
        %v611 = vsel %vm383, %v374, 0
        %v614 = vsel %vm383, %v375, 0
        %v617 = vsel %vm383, %v376, 0
        %v620 = vsel %vm383, %v377, 0
        %v623 = vsel %vm383, %v378, 0
        %625 = vmatprep.subr.mxu0 0.0
        %626 = vmatpush1.msra.mxu0 %v379
        %627 = vmatprep.subr.mxu0 0.0
        %628 = vmatpush1.msra.mxu0 %v380
        %629 = vmatprep.subr.mxu0 0.0
        %630 = vmatpush1.msra.mxu0 0.0
        %631 = vmatprep.subr.mxu0 0.0
        %632 = vmatpush1.msra.mxu0 0.0
        %633 = vmatprep.subr.mxu0 0.0
        %634 = vmatpush1.msra.mxu0 0.0
        %635 = vmatprep.subr.mxu0 0.0
        %636 = vmatpush1.msra.mxu0 0.0
        %637 = vmatprep.subr.mxu0 0.0
        %638 = vmatpush1.msra.mxu0 0.0
        %639 = vmatprep.subr.mxu0 0.0
        %640 = vmatpush1.msra.mxu0 0.0
        %641 = vmatprep.subr.mxu0 0.0
        %642 = vmatpush1.msra.mxu0 0.0
        %643 = vmatprep.subr.mxu0 0.0
        %644 = vmatpush1.msra.mxu0 0.0
        %645 = vmatprep.subr.mxu0 0.0
        %646 = vmatpush1.msra.mxu0 0.0
        %647 = vmatprep.subr.mxu0 0.0
        %648 = vmatpush1.msra.mxu0 0.0
        %649 = vmatprep.subr.mxu0 0.0
        %650 = vmatpush1.msra.mxu0 0.0
        %651 = vmatprep.subr.mxu0 0.0
        %652 = vmatpush1.msra.mxu0 0.0
        %653 = vmatprep.subr.mxu0 0.0
        %654 = vmatpush1.msra.mxu0 0.0
        %655 = vmatprep.subr.mxu0 0.0
        %656 = vmatpush1.msra.mxu0 0.0
        %657 = vmatprep.subr.mxu0 0.0
        %658 = vmatpush1.msra.mxu0 0.0
        %659 = vmatprep.subr.mxu0 0.0
        %660 = vmatpush1.msra.mxu0 0.0
        %661 = vmatprep.subr.mxu0 0.0
        %662 = vmatpush1.msra.mxu0 0.0
        %663 = vmatprep.subr.mxu0 0.0
        %664 = vmatpush1.msra.mxu0 0.0
        %665 = vmatprep.subr.mxu0 0.0
        %666 = vmatpush1.msra.mxu0 0.0
        %667 = vmatprep.subr.mxu0 0.0
        %668 = vmatpush1.msra.mxu0 0.0
        %669 = vmatprep.subr.mxu0 0.0
        %670 = vmatpush1.msra.mxu0 0.0
        %671 = vmatprep.subr.mxu0 0.0
        %672 = vmatpush1.msra.mxu0 0.0
        %673 = vmatprep.subr.mxu0 0.0
        %674 = vmatpush1.msra.mxu0 0.0
        %675 = vmatprep.subr.mxu0 0.0
        %676 = vmatpush1.msra.mxu0 0.0
        %677 = vmatprep.subr.mxu0 0.0
        %678 = vmatpush1.msra.mxu0 0.0
        %679 = vmatprep.subr.mxu0 0.0
        %680 = vmatpush1.msra.mxu0 0.0
        %681 = vmatprep.subr.mxu0 0.0
        %682 = vmatpush1.msra.mxu0 0.0
        %683 = vmatprep.subr.mxu0 0.0
        %684 = vmatpush1.msra.mxu0 0.0
        %685 = vmatprep.subr.mxu0 0.0
        %686 = vmatpush1.msra.mxu0 0.0
        %687 = vmatprep.subr.mxu0 0.0
        %688 = vmatpush1.msra.mxu0 0.0
        %689 = vmatprep.mubr.f32.mxu0 0.0
        %690 = vmatmul.mubr.f32.gmra.mrb[0].mxu0 %v578
        %v691 = vpop.f32.mrb[0].mxu0
        %v692 = vadd.f32 %v499, %v691
        %v693 = vpop.f32.mrb[0].mxu0
        %694 = vmatprep.mubr.f32.mxu0 0.0
        %695 = vmatmul.mubr.f32.gmra.mrb[0].mxu0 %v581
        %v696 = vpop.f32.mrb[0].mxu0
        %v697 = vadd.f32 %v504, %v696
        %v698 = vpop.f32.mrb[0].mxu0
        %699 = vmatprep.mubr.f32.mxu0 0.0
        %700 = vmatmul.mubr.f32.gmra.mrb[0].mxu0 %v584
        %v701 = vpop.f32.mrb[0].mxu0
        %v702 = vadd.f32 %v509, %v701
        %v703 = vpop.f32.mrb[0].mxu0
        %704 = vmatprep.mubr.f32.mxu0 0.0
        %705 = vmatmul.mubr.f32.gmra.mrb[0].mxu0 %v587
        %v706 = vpop.f32.mrb[0].mxu0
        %v707 = vadd.f32 %v514, %v706
        %v708 = vpop.f32.mrb[0].mxu0
        %709 = vmatprep.mubr.f32.mxu0 0.0
        %710 = vmatmul.mubr.f32.gmra.mrb[0].mxu0 %v590
        %v711 = vpop.f32.mrb[0].mxu0
        %v712 = vadd.f32 %v519, %v711
        %v713 = vpop.f32.mrb[0].mxu0
        %714 = vmatprep.mubr.f32.mxu0 0.0
        %715 = vmatmul.mubr.f32.gmra.mrb[0].mxu0 %v593
        %v716 = vpop.f32.mrb[0].mxu0
        %v717 = vadd.f32 %v524, %v716
        %v718 = vpop.f32.mrb[0].mxu0
        %719 = vmatprep.mubr.f32.mxu0 0.0
        %720 = vmatmul.mubr.f32.gmra.mrb[0].mxu0 %v596
        %v721 = vpop.f32.mrb[0].mxu0
        %v722 = vadd.f32 %v529, %v721
        %v723 = vpop.f32.mrb[0].mxu0
        %724 = vmatprep.mubr.f32.mxu0 0.0
        %725 = vmatmul.mubr.f32.gmra.mrb[0].mxu0 %v599
        %v726 = vpop.f32.mrb[0].mxu0
        %v727 = vadd.f32 %v534, %v726
        %v728 = vpop.f32.mrb[0].mxu0
        %729 = vmatprep.mubr.f32.mxu0 0.0
        %730 = vmatmul.mubr.f32.gmra.mrb[0].mxu0 %v602
        %v731 = vpop.f32.mrb[0].mxu0
        %v732 = vadd.f32 %v539, %v731
        %v733 = vpop.f32.mrb[0].mxu0
        %734 = vmatprep.mubr.f32.mxu0 0.0
        %735 = vmatmul.mubr.f32.gmra.mrb[0].mxu0 %v605
        %v736 = vpop.f32.mrb[0].mxu0
        %v737 = vadd.f32 %v544, %v736
        %v738 = vpop.f32.mrb[0].mxu0
        %739 = vmatprep.mubr.f32.mxu0 0.0
        %740 = vmatmul.mubr.f32.gmra.mrb[0].mxu0 %v608
        %v741 = vpop.f32.mrb[0].mxu0
        %v742 = vadd.f32 %v549, %v741
        %v743 = vpop.f32.mrb[0].mxu0
        %744 = vmatprep.mubr.f32.mxu0 0.0
        %745 = vmatmul.mubr.f32.gmra.mrb[0].mxu0 %v611
        %v746 = vpop.f32.mrb[0].mxu0
        %v747 = vadd.f32 %v554, %v746
        %v748 = vpop.f32.mrb[0].mxu0
        %749 = vmatprep.mubr.f32.mxu0 0.0
        %750 = vmatmul.mubr.f32.gmra.mrb[0].mxu0 %v614
        %v751 = vpop.f32.mrb[0].mxu0
        %v752 = vadd.f32 %v559, %v751
        %v753 = vpop.f32.mrb[0].mxu0
        %754 = vmatprep.mubr.f32.mxu0 0.0
        %755 = vmatmul.mubr.f32.gmra.mrb[0].mxu0 %v617
        %v756 = vpop.f32.mrb[0].mxu0
        %v757 = vadd.f32 %v564, %v756
        %v758 = vpop.f32.mrb[0].mxu0
        %759 = vmatprep.mubr.f32.mxu0 0.0
        %760 = vmatmul.mubr.f32.gmra.mrb[0].mxu0 %v620
        %v761 = vpop.f32.mrb[0].mxu0
        %v762 = vadd.f32 %v569, %v761
        %v763 = vpop.f32.mrb[0].mxu0
        %764 = vmatprep.mubr.f32.mxu0 0.0
        %765 = vmatmul.mubr.f32.gmra.mrb[0].mxu0 %v623
        %v766 = vpop.f32.mrb[0].mxu0
        %v767 = vadd.f32 %v574, %v766
        %v768 = vpop.f32.mrb[0].mxu0
        %769 = vdwg.mxu0
        %v770 = vld [vmem:[%s2] sm:$0x1]
        %v771 = vlaneseq
        %v772 = vshrl.u32 %v771, 7
        %v773 = vsub.s32 0, %v772
        %v774 = vrot.slane %v770, %v773
        %v775 = vadd.f32 %v692, %v774
        %v776 = vadd.f32 %v697, %v774
        %v777 = vadd.f32 %v702, %v774
        %v778 = vadd.f32 %v707, %v774
        %v779 = vadd.f32 %v712, %v774
        %v780 = vadd.f32 %v717, %v774
        %v781 = vadd.f32 %v722, %v774
        %v782 = vadd.f32 %v727, %v774
        %v783 = vadd.f32 %v732, %v774
        %v784 = vadd.f32 %v737, %v774
        %v785 = vadd.f32 %v742, %v774
        %v786 = vadd.f32 %v747, %v774
        %v787 = vadd.f32 %v752, %v774
        %v788 = vadd.f32 %v757, %v774
        %v789 = vadd.f32 %v762, %v774
        %v790 = vadd.f32 %v767, %v774
        %791 = vmax.xlane.f32.xlu0 %v775
        %v792 = vpop.xlane.xlu0 %791
        %793 = vmax.xlane.f32.xlu0 %v776
        %v794 = vpop.xlane.xlu0 %793
        %795 = vmax.xlane.f32.xlu0 %v777
        %v796 = vpop.xlane.xlu0 %795
        %797 = vmax.xlane.f32.xlu0 %v778
        %v798 = vpop.xlane.xlu0 %797
        %799 = vmax.xlane.f32.xlu0 %v779
        %v800 = vpop.xlane.xlu0 %799
        %801 = vmax.xlane.f32.xlu0 %v780
        %v802 = vpop.xlane.xlu0 %801
        %803 = vmax.xlane.f32.xlu0 %v781
        %v804 = vpop.xlane.xlu0 %803
        %805 = vmax.xlane.f32.xlu0 %v782
        %v806 = vpop.xlane.xlu0 %805
        %807 = vmax.xlane.f32.xlu0 %v783
        %v808 = vpop.xlane.xlu0 %807
        %809 = vmax.xlane.f32.xlu0 %v784
        %v810 = vpop.xlane.xlu0 %809
        %811 = vmax.xlane.f32.xlu0 %v785
        %v812 = vpop.xlane.xlu0 %811
        %813 = vmax.xlane.f32.xlu0 %v786
        %v814 = vpop.xlane.xlu0 %813
        %815 = vmax.xlane.f32.xlu0 %v787
        %v816 = vpop.xlane.xlu0 %815
        %817 = vmax.xlane.f32.xlu0 %v788
        %v818 = vpop.xlane.xlu0 %817
        %819 = vmax.xlane.f32.xlu0 %v789
        %v820 = vpop.xlane.xlu0 %819
        %821 = vmax.xlane.f32.xlu0 %v790
        %v822 = vpop.xlane.xlu0 %821
        %v823 = vsub.f32 %v775, %v792
        %v824 = vsub.f32 %v776, %v794
        %v825 = vsub.f32 %v777, %v796
        %v826 = vsub.f32 %v778, %v798
        %v827 = vsub.f32 %v779, %v800
        %v828 = vsub.f32 %v780, %v802
        %v829 = vsub.f32 %v781, %v804
        %v830 = vsub.f32 %v782, %v806
        %v831 = vsub.f32 %v783, %v808
        %v832 = vsub.f32 %v784, %v810
        %v833 = vsub.f32 %v785, %v812
        %v834 = vsub.f32 %v786, %v814
        %v835 = vsub.f32 %v787, %v816
        %v836 = vsub.f32 %v788, %v818
        %v837 = vsub.f32 %v789, %v820
        %v838 = vsub.f32 %v790, %v822
        %v839 = vmul.f32 %v823, 1.442695
        %v840 = vpow.pop %v839
        %v841 = vmul.f32 %v824, 1.442695
        %v842 = vpow.pop %v841
        %v843 = vmul.f32 %v825, 1.442695
        %v844 = vpow.pop %v843
        %v845 = vmul.f32 %v826, 1.442695
        %v846 = vpow.pop %v845
        %v847 = vmul.f32 %v827, 1.442695
        %v848 = vpow.pop %v847
        %v849 = vmul.f32 %v828, 1.442695
        %v850 = vpow.pop %v849
        %v851 = vmul.f32 %v829, 1.442695
        %v852 = vpow.pop %v851
        %v853 = vmul.f32 %v830, 1.442695
        %v854 = vpow.pop %v853
        %v855 = vmul.f32 %v831, 1.442695
        %v856 = vpow.pop %v855
        %v857 = vmul.f32 %v832, 1.442695
        %v858 = vpow.pop %v857
        %v859 = vmul.f32 %v833, 1.442695
        %v860 = vpow.pop %v859
        %v861 = vmul.f32 %v834, 1.442695
        %v862 = vpow.pop %v861
        %v863 = vmul.f32 %v835, 1.442695
        %v864 = vpow.pop %v863
        %v865 = vmul.f32 %v836, 1.442695
        %v866 = vpow.pop %v865
        %v867 = vmul.f32 %v837, 1.442695
        %v868 = vpow.pop %v867
        %v869 = vmul.f32 %v838, 1.442695
        %v870 = vpow.pop %v869
        %871 = vadd.xlane.f32.xlu0 %v840
        %v872 = vpop.xlane.xlu0 %871
        %873 = vadd.xlane.f32.xlu0 %v842
        %v874 = vpop.xlane.xlu0 %873
        %875 = vadd.xlane.f32.xlu0 %v844
        %v876 = vpop.xlane.xlu0 %875
        %877 = vadd.xlane.f32.xlu0 %v846
        %v878 = vpop.xlane.xlu0 %877
        %879 = vadd.xlane.f32.xlu0 %v848
        %v880 = vpop.xlane.xlu0 %879
        %881 = vadd.xlane.f32.xlu0 %v850
        %v882 = vpop.xlane.xlu0 %881
        %883 = vadd.xlane.f32.xlu0 %v852
        %v884 = vpop.xlane.xlu0 %883
        %885 = vadd.xlane.f32.xlu0 %v854
        %v886 = vpop.xlane.xlu0 %885
        %887 = vadd.xlane.f32.xlu0 %v856
        %v888 = vpop.xlane.xlu0 %887
        %889 = vadd.xlane.f32.xlu0 %v858
        %v890 = vpop.xlane.xlu0 %889
        %891 = vadd.xlane.f32.xlu0 %v860
        %v892 = vpop.xlane.xlu0 %891
        %893 = vadd.xlane.f32.xlu0 %v862
        %v894 = vpop.xlane.xlu0 %893
        %895 = vadd.xlane.f32.xlu0 %v864
        %v896 = vpop.xlane.xlu0 %895
        %897 = vadd.xlane.f32.xlu0 %v866
        %v898 = vpop.xlane.xlu0 %897
        %899 = vadd.xlane.f32.xlu0 %v868
        %v900 = vpop.xlane.xlu0 %899
        %901 = vadd.xlane.f32.xlu0 %v870
        %v902 = vpop.xlane.xlu0 %901
        %v903 = vld [vmem:[%s1 + $0x20] sm:$0xff]
        %v904 = vld [vmem:[%s1 + $0x28] sm:$0xff]
        %v905 = vld [vmem:[%s2 + $0x1] sm:$0x1]
        %v906 = vlaneseq
        %v907 = vshrl.u32 %v906, 7
        %v908 = vsub.s32 0, %v907
        %v909 = vrot.slane %v905, %v908
        %v911 = vsel %vm383, %v347, 0
        %v914 = vsel %vm383, %v348, 0
        %v917 = vsel %vm383, %v349, 0
        %v920 = vsel %vm383, %v350, 0
        %v923 = vsel %vm383, %v351, 0
        %v926 = vsel %vm383, %v352, 0
        %v929 = vsel %vm383, %v353, 0
        %v932 = vsel %vm383, %v354, 0
        %v935 = vsel %vm383, %v355, 0
        %v938 = vsel %vm383, %v356, 0
        %v941 = vsel %vm383, %v357, 0
        %v944 = vsel %vm383, %v358, 0
        %v947 = vsel %vm383, %v359, 0
        %v950 = vsel %vm383, %v360, 0
        %v953 = vsel %vm383, %v361, 0
        %v956 = vsel %vm383, %v362, 0
        %958 = vmatprep.subr.mxu0 0.0
        %959 = vmatpush1.msra.mxu0 %v903
        %960 = vmatprep.subr.mxu0 0.0
        %961 = vmatpush1.msra.mxu0 %v904
        %962 = vmatprep.subr.mxu0 0.0
        %963 = vmatpush1.msra.mxu0 0.0
        %964 = vmatprep.subr.mxu0 0.0
        %965 = vmatpush1.msra.mxu0 0.0
        %966 = vmatprep.subr.mxu0 0.0
        %967 = vmatpush1.msra.mxu0 0.0
        %968 = vmatprep.subr.mxu0 0.0
        %969 = vmatpush1.msra.mxu0 0.0
        %970 = vmatprep.subr.mxu0 0.0
        %971 = vmatpush1.msra.mxu0 0.0
        %972 = vmatprep.subr.mxu0 0.0
        %973 = vmatpush1.msra.mxu0 0.0
        %974 = vmatprep.subr.mxu0 0.0
        %975 = vmatpush1.msra.mxu0 0.0
        %976 = vmatprep.subr.mxu0 0.0
        %977 = vmatpush1.msra.mxu0 0.0
        %978 = vmatprep.subr.mxu0 0.0
        %979 = vmatpush1.msra.mxu0 0.0
        %980 = vmatprep.subr.mxu0 0.0
        %981 = vmatpush1.msra.mxu0 0.0
        %982 = vmatprep.subr.mxu0 0.0
        %983 = vmatpush1.msra.mxu0 0.0
        %984 = vmatprep.subr.mxu0 0.0
        %985 = vmatpush1.msra.mxu0 0.0
        %986 = vmatprep.subr.mxu0 0.0
        %987 = vmatpush1.msra.mxu0 0.0
        %988 = vmatprep.subr.mxu0 0.0
        %989 = vmatpush1.msra.mxu0 0.0
        %990 = vmatprep.subr.mxu0 0.0
        %991 = vmatpush1.msra.mxu0 0.0
        %992 = vmatprep.subr.mxu0 0.0
        %993 = vmatpush1.msra.mxu0 0.0
        %994 = vmatprep.subr.mxu0 0.0
        %995 = vmatpush1.msra.mxu0 0.0
        %996 = vmatprep.subr.mxu0 0.0
        %997 = vmatpush1.msra.mxu0 0.0
        %998 = vmatprep.subr.mxu0 0.0
        %999 = vmatpush1.msra.mxu0 0.0
        %1000 = vmatprep.subr.mxu0 0.0
        %1001 = vmatpush1.msra.mxu0 0.0
        %1002 = vmatprep.subr.mxu0 0.0
        %1003 = vmatpush1.msra.mxu0 0.0
        %1004 = vmatprep.subr.mxu0 0.0
        %1005 = vmatpush1.msra.mxu0 0.0
        %1006 = vmatprep.subr.mxu0 0.0
        %1007 = vmatpush1.msra.mxu0 0.0
        %1008 = vmatprep.subr.mxu0 0.0
        %1009 = vmatpush1.msra.mxu0 0.0
        %1010 = vmatprep.subr.mxu0 0.0
        %1011 = vmatpush1.msra.mxu0 0.0
        %1012 = vmatprep.subr.mxu0 0.0
        %1013 = vmatpush1.msra.mxu0 0.0
        %1014 = vmatprep.subr.mxu0 0.0
        %1015 = vmatpush1.msra.mxu0 0.0
        %1016 = vmatprep.subr.mxu0 0.0
        %1017 = vmatpush1.msra.mxu0 0.0
        %1018 = vmatprep.subr.mxu0 0.0
        %1019 = vmatpush1.msra.mxu0 0.0
        %1020 = vmatprep.subr.mxu0 0.0
        %1021 = vmatpush1.msra.mxu0 0.0
        %1022 = vmatprep.mubr.f32.mxu0 0.0
        %1023 = vmatmul.mubr.f32.gmra.mrb[0].mxu0 %v911
        %v1024 = vpop.f32.mrb[0].mxu0
        %v1025 = vadd.f32 %v909, %v1024
        %v1026 = vpop.f32.mrb[0].mxu0
        %1027 = vmatprep.mubr.f32.mxu0 0.0
        %1028 = vmatmul.mubr.f32.gmra.mrb[0].mxu0 %v914
        %v1029 = vpop.f32.mrb[0].mxu0
        %v1030 = vadd.f32 %v909, %v1029
        %v1031 = vpop.f32.mrb[0].mxu0
        %1032 = vmatprep.mubr.f32.mxu0 0.0
        %1033 = vmatmul.mubr.f32.gmra.mrb[0].mxu0 %v917
        %v1034 = vpop.f32.mrb[0].mxu0
        %v1035 = vadd.f32 %v909, %v1034
        %v1036 = vpop.f32.mrb[0].mxu0
        %1037 = vmatprep.mubr.f32.mxu0 0.0
        %1038 = vmatmul.mubr.f32.gmra.mrb[0].mxu0 %v920
        %v1039 = vpop.f32.mrb[0].mxu0
        %v1040 = vadd.f32 %v909, %v1039
        %v1041 = vpop.f32.mrb[0].mxu0
        %1042 = vmatprep.mubr.f32.mxu0 0.0
        %1043 = vmatmul.mubr.f32.gmra.mrb[0].mxu0 %v923
        %v1044 = vpop.f32.mrb[0].mxu0
        %v1045 = vadd.f32 %v909, %v1044
        %v1046 = vpop.f32.mrb[0].mxu0
        %1047 = vmatprep.mubr.f32.mxu0 0.0
        %1048 = vmatmul.mubr.f32.gmra.mrb[0].mxu0 %v926
        %v1049 = vpop.f32.mrb[0].mxu0
        %v1050 = vadd.f32 %v909, %v1049
        %v1051 = vpop.f32.mrb[0].mxu0
        %1052 = vmatprep.mubr.f32.mxu0 0.0
        %1053 = vmatmul.mubr.f32.gmra.mrb[0].mxu0 %v929
        %v1054 = vpop.f32.mrb[0].mxu0
        %v1055 = vadd.f32 %v909, %v1054
        %v1056 = vpop.f32.mrb[0].mxu0
        %1057 = vmatprep.mubr.f32.mxu0 0.0
        %1058 = vmatmul.mubr.f32.gmra.mrb[0].mxu0 %v932
        %v1059 = vpop.f32.mrb[0].mxu0
        %v1060 = vadd.f32 %v909, %v1059
        %v1061 = vpop.f32.mrb[0].mxu0
        %1062 = vmatprep.mubr.f32.mxu0 0.0
        %1063 = vmatmul.mubr.f32.gmra.mrb[0].mxu0 %v935
        %v1064 = vpop.f32.mrb[0].mxu0
        %v1065 = vadd.f32 %v909, %v1064
        %v1066 = vpop.f32.mrb[0].mxu0
        %1067 = vmatprep.mubr.f32.mxu0 0.0
        %1068 = vmatmul.mubr.f32.gmra.mrb[0].mxu0 %v938
        %v1069 = vpop.f32.mrb[0].mxu0
        %v1070 = vadd.f32 %v909, %v1069
        %v1071 = vpop.f32.mrb[0].mxu0
        %1072 = vmatprep.mubr.f32.mxu0 0.0
        %1073 = vmatmul.mubr.f32.gmra.mrb[0].mxu0 %v941
        %v1074 = vpop.f32.mrb[0].mxu0
        %v1075 = vadd.f32 %v909, %v1074
        %v1076 = vpop.f32.mrb[0].mxu0
        %1077 = vmatprep.mubr.f32.mxu0 0.0
        %1078 = vmatmul.mubr.f32.gmra.mrb[0].mxu0 %v944
        %v1079 = vpop.f32.mrb[0].mxu0
        %v1080 = vadd.f32 %v909, %v1079
        %v1081 = vpop.f32.mrb[0].mxu0
        %1082 = vmatprep.mubr.f32.mxu0 0.0
        %1083 = vmatmul.mubr.f32.gmra.mrb[0].mxu0 %v947
        %v1084 = vpop.f32.mrb[0].mxu0
        %v1085 = vadd.f32 %v909, %v1084
        %v1086 = vpop.f32.mrb[0].mxu0
        %1087 = vmatprep.mubr.f32.mxu0 0.0
        %1088 = vmatmul.mubr.f32.gmra.mrb[0].mxu0 %v950
        %v1089 = vpop.f32.mrb[0].mxu0
        %v1090 = vadd.f32 %v909, %v1089
        %v1091 = vpop.f32.mrb[0].mxu0
        %1092 = vmatprep.mubr.f32.mxu0 0.0
        %1093 = vmatmul.mubr.f32.gmra.mrb[0].mxu0 %v953
        %v1094 = vpop.f32.mrb[0].mxu0
        %v1095 = vadd.f32 %v909, %v1094
        %v1096 = vpop.f32.mrb[0].mxu0
        %1097 = vmatprep.mubr.f32.mxu0 0.0
        %1098 = vmatmul.mubr.f32.gmra.mrb[0].mxu0 %v956
        %v1099 = vpop.f32.mrb[0].mxu0
        %v1100 = vadd.f32 %v909, %v1099
        %v1101 = vpop.f32.mrb[0].mxu0
        %1102 = vdwg.mxu0
        %v1103 = vmul.f32 %v840, %v1025
        %v1104 = vmul.f32 %v842, %v1030
        %v1105 = vmul.f32 %v844, %v1035
        %v1106 = vmul.f32 %v846, %v1040
        %v1107 = vmul.f32 %v848, %v1045
        %v1108 = vmul.f32 %v850, %v1050
        %v1109 = vmul.f32 %v852, %v1055
        %v1110 = vmul.f32 %v854, %v1060
        %v1111 = vmul.f32 %v856, %v1065
        %v1112 = vmul.f32 %v858, %v1070
        %v1113 = vmul.f32 %v860, %v1075
        %v1114 = vmul.f32 %v862, %v1080
        %v1115 = vmul.f32 %v864, %v1085
        %v1116 = vmul.f32 %v866, %v1090
        %v1117 = vmul.f32 %v868, %v1095
        %v1118 = vmul.f32 %v870, %v1100
        %v1119 = vld [vmem:[%s1 + $0x30] sm:$0xff]
        %v1120 = vld [vmem:[%s1 + $0x38] sm:$0xff]
        %v1121 = vld [vmem:[%s1 + $0x40] sm:$0xff]
        %v1122 = vld [vmem:[%s1 + $0x48] sm:$0xff]
        %v1123 = vld [vmem:[%s1 + $0x50] sm:$0xff]
        %v1124 = vld [vmem:[%s1 + $0x58] sm:$0xff]
        %v1125 = vld [vmem:[%s1 + $0x60] sm:$0xff]
        %v1126 = vld [vmem:[%s1 + $0x68] sm:$0xff]
        %v1127 = vld [vmem:[%s1 + $0x70] sm:$0xff]
        %v1128 = vld [vmem:[%s1 + $0x78] sm:$0xff]
        %v1129 = vld [vmem:[%s1 + $0x80] sm:$0xff]
        %v1130 = vld [vmem:[%s1 + $0x88] sm:$0xff]
        %v1131 = vld [vmem:[%s1 + $0x90] sm:$0xff]
        %v1132 = vld [vmem:[%s1 + $0x98] sm:$0xff]
        %v1133 = vld [vmem:[%s1 + $0xa0] sm:$0xff]
        %v1134 = vld [vmem:[%s1 + $0xa8] sm:$0xff]
        %1135 = vmatprep.subr.mxu0 0.0
        %1136 = vmatpush1.msra.mxu0 %v1119
        %1137 = vmatprep.subr.mxu0 0.0
        %1138 = vmatpush1.msra.mxu0 %v1120
        %1139 = vmatprep.subr.mxu0 0.0
        %1140 = vmatpush1.msra.mxu0 %v1121
        %1141 = vmatprep.subr.mxu0 0.0
        %1142 = vmatpush1.msra.mxu0 %v1122
        %1143 = vmatprep.subr.mxu0 0.0
        %1144 = vmatpush1.msra.mxu0 %v1123
        %1145 = vmatprep.subr.mxu0 0.0
        %1146 = vmatpush1.msra.mxu0 %v1124
        %1147 = vmatprep.subr.mxu0 0.0
        %1148 = vmatpush1.msra.mxu0 %v1125
        %1149 = vmatprep.subr.mxu0 0.0
        %1150 = vmatpush1.msra.mxu0 %v1126
        %1151 = vmatprep.subr.mxu0 0.0
        %1152 = vmatpush1.msra.mxu0 %v1127
        %1153 = vmatprep.subr.mxu0 0.0
        %1154 = vmatpush1.msra.mxu0 %v1128
        %1155 = vmatprep.subr.mxu0 0.0
        %1156 = vmatpush1.msra.mxu0 %v1129
        %1157 = vmatprep.subr.mxu0 0.0
        %1158 = vmatpush1.msra.mxu0 %v1130
        %1159 = vmatprep.subr.mxu0 0.0
        %1160 = vmatpush1.msra.mxu0 %v1131
        %1161 = vmatprep.subr.mxu0 0.0
        %1162 = vmatpush1.msra.mxu0 %v1132
        %1163 = vmatprep.subr.mxu0 0.0
        %1164 = vmatpush1.msra.mxu0 %v1133
        %1165 = vmatprep.subr.mxu0 0.0
        %1166 = vmatpush1.msra.mxu0 %v1134
        %1167 = vmatprep.subr.mxu0 0.0
        %1168 = vmatpush1.msra.mxu0 0.0
        %1169 = vmatprep.subr.mxu0 0.0
        %1170 = vmatpush1.msra.mxu0 0.0
        %1171 = vmatprep.subr.mxu0 0.0
        %1172 = vmatpush1.msra.mxu0 0.0
        %1173 = vmatprep.subr.mxu0 0.0
        %1174 = vmatpush1.msra.mxu0 0.0
        %1175 = vmatprep.subr.mxu0 0.0
        %1176 = vmatpush1.msra.mxu0 0.0
        %1177 = vmatprep.subr.mxu0 0.0
        %1178 = vmatpush1.msra.mxu0 0.0
        %1179 = vmatprep.subr.mxu0 0.0
        %1180 = vmatpush1.msra.mxu0 0.0
        %1181 = vmatprep.subr.mxu0 0.0
        %1182 = vmatpush1.msra.mxu0 0.0
        %1183 = vmatprep.subr.mxu0 0.0
        %1184 = vmatpush1.msra.mxu0 0.0
        %1185 = vmatprep.subr.mxu0 0.0
        %1186 = vmatpush1.msra.mxu0 0.0
        %1187 = vmatprep.subr.mxu0 0.0
        %1188 = vmatpush1.msra.mxu0 0.0
        %1189 = vmatprep.subr.mxu0 0.0
        %1190 = vmatpush1.msra.mxu0 0.0
        %1191 = vmatprep.subr.mxu0 0.0
        %1192 = vmatpush1.msra.mxu0 0.0
        %1193 = vmatprep.subr.mxu0 0.0
        %1194 = vmatpush1.msra.mxu0 0.0
        %1195 = vmatprep.subr.mxu0 0.0
        %1196 = vmatpush1.msra.mxu0 0.0
        %1197 = vmatprep.subr.mxu0 0.0
        %1198 = vmatpush1.msra.mxu0 0.0
        %1199 = vmatprep.mubr.f32.mxu0 0.0
        %1200 = vmatmul.mubr.f32.gmra.mrb[0].mxu0 %v1103
        %v1201 = vpop.f32.mrb[0].mxu0
        %v1202 = vadd.f32 0.0, %v1201
        %v1203 = vpop.f32.mrb[0].mxu0
        %1204 = vmatprep.mubr.f32.mxu0 0.0
        %1205 = vmatmul.mubr.f32.gmra.mrb[0].mxu0 %v1104
        %v1206 = vpop.f32.mrb[0].mxu0
        %v1207 = vadd.f32 0.0, %v1206
        %v1208 = vpop.f32.mrb[0].mxu0
        %1209 = vmatprep.mubr.f32.mxu0 0.0
        %1210 = vmatmul.mubr.f32.gmra.mrb[0].mxu0 %v1105
        %v1211 = vpop.f32.mrb[0].mxu0
        %v1212 = vadd.f32 0.0, %v1211
        %v1213 = vpop.f32.mrb[0].mxu0
        %1214 = vmatprep.mubr.f32.mxu0 0.0
        %1215 = vmatmul.mubr.f32.gmra.mrb[0].mxu0 %v1106
        %v1216 = vpop.f32.mrb[0].mxu0
        %v1217 = vadd.f32 0.0, %v1216
        %v1218 = vpop.f32.mrb[0].mxu0
        %1219 = vmatprep.mubr.f32.mxu0 0.0
        %1220 = vmatmul.mubr.f32.gmra.mrb[0].mxu0 %v1107
        %v1221 = vpop.f32.mrb[0].mxu0
        %v1222 = vadd.f32 0.0, %v1221
        %v1223 = vpop.f32.mrb[0].mxu0
        %1224 = vmatprep.mubr.f32.mxu0 0.0
        %1225 = vmatmul.mubr.f32.gmra.mrb[0].mxu0 %v1108
        %v1226 = vpop.f32.mrb[0].mxu0
        %v1227 = vadd.f32 0.0, %v1226
        %v1228 = vpop.f32.mrb[0].mxu0
        %1229 = vmatprep.mubr.f32.mxu0 0.0
        %1230 = vmatmul.mubr.f32.gmra.mrb[0].mxu0 %v1109
        %v1231 = vpop.f32.mrb[0].mxu0
        %v1232 = vadd.f32 0.0, %v1231
        %v1233 = vpop.f32.mrb[0].mxu0
        %1234 = vmatprep.mubr.f32.mxu0 0.0
        %1235 = vmatmul.mubr.f32.gmra.mrb[0].mxu0 %v1110
        %v1236 = vpop.f32.mrb[0].mxu0
        %v1237 = vadd.f32 0.0, %v1236
        %v1238 = vpop.f32.mrb[0].mxu0
        %1239 = vmatprep.mubr.f32.mxu0 0.0
        %1240 = vmatmul.mubr.f32.gmra.mrb[0].mxu0 %v1111
        %v1241 = vpop.f32.mrb[0].mxu0
        %v1242 = vadd.f32 0.0, %v1241
        %v1243 = vpop.f32.mrb[0].mxu0
        %1244 = vmatprep.mubr.f32.mxu0 0.0
        %1245 = vmatmul.mubr.f32.gmra.mrb[0].mxu0 %v1112
        %v1246 = vpop.f32.mrb[0].mxu0
        %v1247 = vadd.f32 0.0, %v1246
        %v1248 = vpop.f32.mrb[0].mxu0
        %1249 = vmatprep.mubr.f32.mxu0 0.0
        %1250 = vmatmul.mubr.f32.gmra.mrb[0].mxu0 %v1113
        %v1251 = vpop.f32.mrb[0].mxu0
        %v1252 = vadd.f32 0.0, %v1251
        %v1253 = vpop.f32.mrb[0].mxu0
        %1254 = vmatprep.mubr.f32.mxu0 0.0
        %1255 = vmatmul.mubr.f32.gmra.mrb[0].mxu0 %v1114
        %v1256 = vpop.f32.mrb[0].mxu0
        %v1257 = vadd.f32 0.0, %v1256
        %v1258 = vpop.f32.mrb[0].mxu0
        %1259 = vmatprep.mubr.f32.mxu0 0.0
        %1260 = vmatmul.mubr.f32.gmra.mrb[0].mxu0 %v1115
        %v1261 = vpop.f32.mrb[0].mxu0
        %v1262 = vadd.f32 0.0, %v1261
        %v1263 = vpop.f32.mrb[0].mxu0
        %1264 = vmatprep.mubr.f32.mxu0 0.0
        %1265 = vmatmul.mubr.f32.gmra.mrb[0].mxu0 %v1116
        %v1266 = vpop.f32.mrb[0].mxu0
        %v1267 = vadd.f32 0.0, %v1266
        %v1268 = vpop.f32.mrb[0].mxu0
        %1269 = vmatprep.mubr.f32.mxu0 0.0
        %1270 = vmatmul.mubr.f32.gmra.mrb[0].mxu0 %v1117
        %v1271 = vpop.f32.mrb[0].mxu0
        %v1272 = vadd.f32 0.0, %v1271
        %v1273 = vpop.f32.mrb[0].mxu0
        %1274 = vmatprep.mubr.f32.mxu0 0.0
        %1275 = vmatmul.mubr.f32.gmra.mrb[0].mxu0 %v1118
        %v1276 = vpop.f32.mrb[0].mxu0
        %v1277 = vadd.f32 0.0, %v1276
        %v1278 = vpop.f32.mrb[0].mxu0
        %1279 = vdwg.mxu0
        %v1280 = vrcp.pop %v872
        %v1281 = vmul.f32 16.0, %v1280
        %v1282 = vrcp.pop %v874
        %v1283 = vmul.f32 16.0, %v1282
        %v1284 = vrcp.pop %v876
        %v1285 = vmul.f32 16.0, %v1284
        %v1286 = vrcp.pop %v878
        %v1287 = vmul.f32 16.0, %v1286
        %v1288 = vrcp.pop %v880
        %v1289 = vmul.f32 16.0, %v1288
        %v1290 = vrcp.pop %v882
        %v1291 = vmul.f32 16.0, %v1290
        %v1292 = vrcp.pop %v884
        %v1293 = vmul.f32 16.0, %v1292
        %v1294 = vrcp.pop %v886
        %v1295 = vmul.f32 16.0, %v1294
        %v1296 = vrcp.pop %v888
        %v1297 = vmul.f32 16.0, %v1296
        %v1298 = vrcp.pop %v890
        %v1299 = vmul.f32 16.0, %v1298
        %v1300 = vrcp.pop %v892
        %v1301 = vmul.f32 16.0, %v1300
        %v1302 = vrcp.pop %v894
        %v1303 = vmul.f32 16.0, %v1302
        %v1304 = vrcp.pop %v896
        %v1305 = vmul.f32 16.0, %v1304
        %v1306 = vrcp.pop %v898
        %v1307 = vmul.f32 16.0, %v1306
        %v1308 = vrcp.pop %v900
        %v1309 = vmul.f32 16.0, %v1308
        %v1310 = vrcp.pop %v902
        %v1311 = vmul.f32 16.0, %v1310
        %v1312 = vmul.f32 %v1202, %v1281
        %v1313 = vmul.f32 %v1207, %v1283
        %v1314 = vmul.f32 %v1212, %v1285
        %v1315 = vmul.f32 %v1217, %v1287
        %v1316 = vmul.f32 %v1222, %v1289
        %v1317 = vmul.f32 %v1227, %v1291
        %v1318 = vmul.f32 %v1232, %v1293
        %v1319 = vmul.f32 %v1237, %v1295
        %v1320 = vmul.f32 %v1242, %v1297
        %v1321 = vmul.f32 %v1247, %v1299
        %v1322 = vmul.f32 %v1252, %v1301
        %v1323 = vmul.f32 %v1257, %v1303
        %v1324 = vmul.f32 %v1262, %v1305
        %v1325 = vmul.f32 %v1267, %v1307
        %v1326 = vmul.f32 %v1272, %v1309
        %v1327 = vmul.f32 %v1277, %v1311
        %v1328 = vld [vmem:[%s2 + $0x2] sm:$0x1]
        %v1329 = vlaneseq
        %v1330 = vshrl.u32 %v1329, 7
        %v1331 = vsub.s32 0, %v1330
        %v1332 = vrot.slane %v1328, %v1331
        %v1333 = vadd.f32 %v1312, %v1332
        %v1334 = vadd.f32 %v1313, %v1332
        %v1335 = vadd.f32 %v1314, %v1332
        %v1336 = vadd.f32 %v1315, %v1332
        %v1337 = vadd.f32 %v1316, %v1332
        %v1338 = vadd.f32 %v1317, %v1332
        %v1339 = vadd.f32 %v1318, %v1332
        %v1340 = vadd.f32 %v1319, %v1332
        %v1341 = vadd.f32 %v1320, %v1332
        %v1342 = vadd.f32 %v1321, %v1332
        %v1343 = vadd.f32 %v1322, %v1332
        %v1344 = vadd.f32 %v1323, %v1332
        %v1345 = vadd.f32 %v1324, %v1332
        %v1346 = vadd.f32 %v1325, %v1332
        %v1347 = vadd.f32 %v1326, %v1332
        %v1348 = vadd.f32 %v1327, %v1332
        %v1349 = vmax.f32 %v1333, 0.0
        %v1350 = vmax.f32 %v1334, 0.0
        %v1351 = vmax.f32 %v1335, 0.0
        %v1352 = vmax.f32 %v1336, 0.0
        %v1353 = vmax.f32 %v1337, 0.0
        %v1354 = vmax.f32 %v1338, 0.0
        %v1355 = vmax.f32 %v1339, 0.0
        %v1356 = vmax.f32 %v1340, 0.0
        %v1357 = vmax.f32 %v1341, 0.0
        %v1358 = vmax.f32 %v1342, 0.0
        %v1359 = vmax.f32 %v1343, 0.0
        %v1360 = vmax.f32 %v1344, 0.0
        %v1361 = vmax.f32 %v1345, 0.0
        %v1362 = vmax.f32 %v1346, 0.0
        %v1363 = vmax.f32 %v1347, 0.0
        %v1364 = vmax.f32 %v1348, 0.0
        %v1365 = vld [vmem:[%s1 + $0xb0] sm:$0xff]
        %v1366 = vld [vmem:[%s1 + $0xb8] sm:$0xff]
        %v1367 = vld [vmem:[%s1 + $0xc0] sm:$0xff]
        %v1368 = vld [vmem:[%s1 + $0xc8] sm:$0xff]
        %v1369 = vld [vmem:[%s1 + $0xd0] sm:$0xff]
        %v1370 = vld [vmem:[%s1 + $0xd8] sm:$0xff]
        %v1371 = vld [vmem:[%s1 + $0xe0] sm:$0xff]
        %v1372 = vld [vmem:[%s1 + $0xe8] sm:$0xff]
        %v1373 = vld [vmem:[%s1 + $0xf0] sm:$0xff]
        %v1374 = vld [vmem:[%s1 + $0xf8] sm:$0xff]
        %v1375 = vld [vmem:[%s1 + $0x100] sm:$0xff]
        %v1376 = vld [vmem:[%s1 + $0x108] sm:$0xff]
        %v1377 = vld [vmem:[%s1 + $0x110] sm:$0xff]
        %v1378 = vld [vmem:[%s1 + $0x118] sm:$0xff]
        %v1379 = vld [vmem:[%s1 + $0x120] sm:$0xff]
        %v1380 = vld [vmem:[%s1 + $0x128] sm:$0xff]
        %v1381 = vld [vmem:[%s2 + $0x3] sm:$0x1]
        %v1382 = vlaneseq
        %v1383 = vshrl.u32 %v1382, 7
        %v1384 = vsub.s32 0, %v1383
        %v1385 = vrot.slane %v1381, %v1384
        %1386 = vmatprep.subr.mxu0 0.0
        %1387 = vmatpush1.msra.mxu0 %v1365
        %1388 = vmatprep.subr.mxu0 0.0
        %1389 = vmatpush1.msra.mxu0 %v1366
        %1390 = vmatprep.subr.mxu0 0.0
        %1391 = vmatpush1.msra.mxu0 %v1367
        %1392 = vmatprep.subr.mxu0 0.0
        %1393 = vmatpush1.msra.mxu0 %v1368
        %1394 = vmatprep.subr.mxu0 0.0
        %1395 = vmatpush1.msra.mxu0 %v1369
        %1396 = vmatprep.subr.mxu0 0.0
        %1397 = vmatpush1.msra.mxu0 %v1370
        %1398 = vmatprep.subr.mxu0 0.0
        %1399 = vmatpush1.msra.mxu0 %v1371
        %1400 = vmatprep.subr.mxu0 0.0
        %1401 = vmatpush1.msra.mxu0 %v1372
        %1402 = vmatprep.subr.mxu0 0.0
        %1403 = vmatpush1.msra.mxu0 %v1373
        %1404 = vmatprep.subr.mxu0 0.0
        %1405 = vmatpush1.msra.mxu0 %v1374
        %1406 = vmatprep.subr.mxu0 0.0
        %1407 = vmatpush1.msra.mxu0 %v1375
        %1408 = vmatprep.subr.mxu0 0.0
        %1409 = vmatpush1.msra.mxu0 %v1376
        %1410 = vmatprep.subr.mxu0 0.0
        %1411 = vmatpush1.msra.mxu0 %v1377
        %1412 = vmatprep.subr.mxu0 0.0
        %1413 = vmatpush1.msra.mxu0 %v1378
        %1414 = vmatprep.subr.mxu0 0.0
        %1415 = vmatpush1.msra.mxu0 %v1379
        %1416 = vmatprep.subr.mxu0 0.0
        %1417 = vmatpush1.msra.mxu0 %v1380
        %1418 = vmatprep.subr.mxu0 0.0
        %1419 = vmatpush1.msra.mxu0 0.0
        %1420 = vmatprep.subr.mxu0 0.0
        %1421 = vmatpush1.msra.mxu0 0.0
        %1422 = vmatprep.subr.mxu0 0.0
        %1423 = vmatpush1.msra.mxu0 0.0
        %1424 = vmatprep.subr.mxu0 0.0
        %1425 = vmatpush1.msra.mxu0 0.0
        %1426 = vmatprep.subr.mxu0 0.0
        %1427 = vmatpush1.msra.mxu0 0.0
        %1428 = vmatprep.subr.mxu0 0.0
        %1429 = vmatpush1.msra.mxu0 0.0
        %1430 = vmatprep.subr.mxu0 0.0
        %1431 = vmatpush1.msra.mxu0 0.0
        %1432 = vmatprep.subr.mxu0 0.0
        %1433 = vmatpush1.msra.mxu0 0.0
        %1434 = vmatprep.subr.mxu0 0.0
        %1435 = vmatpush1.msra.mxu0 0.0
        %1436 = vmatprep.subr.mxu0 0.0
        %1437 = vmatpush1.msra.mxu0 0.0
        %1438 = vmatprep.subr.mxu0 0.0
        %1439 = vmatpush1.msra.mxu0 0.0
        %1440 = vmatprep.subr.mxu0 0.0
        %1441 = vmatpush1.msra.mxu0 0.0
        %1442 = vmatprep.subr.mxu0 0.0
        %1443 = vmatpush1.msra.mxu0 0.0
        %1444 = vmatprep.subr.mxu0 0.0
        %1445 = vmatpush1.msra.mxu0 0.0
        %1446 = vmatprep.subr.mxu0 0.0
        %1447 = vmatpush1.msra.mxu0 0.0
        %1448 = vmatprep.subr.mxu0 0.0
        %1449 = vmatpush1.msra.mxu0 0.0
        %1450 = vmatprep.mubr.f32.mxu0 0.0
        %1451 = vmatmul.mubr.f32.gmra.mrb[0].mxu0 %v1349
        %v1452 = vpop.f32.mrb[0].mxu0
        %v1453 = vadd.f32 %v1385, %v1452
        %v1454 = vpop.f32.mrb[0].mxu0
        %1455 = vmatprep.mubr.f32.mxu0 0.0
        %1456 = vmatmul.mubr.f32.gmra.mrb[0].mxu0 %v1350
        %v1457 = vpop.f32.mrb[0].mxu0
        %v1458 = vadd.f32 %v1385, %v1457
        %v1459 = vpop.f32.mrb[0].mxu0
        %1460 = vmatprep.mubr.f32.mxu0 0.0
        %1461 = vmatmul.mubr.f32.gmra.mrb[0].mxu0 %v1351
        %v1462 = vpop.f32.mrb[0].mxu0
        %v1463 = vadd.f32 %v1385, %v1462
        %v1464 = vpop.f32.mrb[0].mxu0
        %1465 = vmatprep.mubr.f32.mxu0 0.0
        %1466 = vmatmul.mubr.f32.gmra.mrb[0].mxu0 %v1352
        %v1467 = vpop.f32.mrb[0].mxu0
        %v1468 = vadd.f32 %v1385, %v1467
        %v1469 = vpop.f32.mrb[0].mxu0
        %1470 = vmatprep.mubr.f32.mxu0 0.0
        %1471 = vmatmul.mubr.f32.gmra.mrb[0].mxu0 %v1353
        %v1472 = vpop.f32.mrb[0].mxu0
        %v1473 = vadd.f32 %v1385, %v1472
        %v1474 = vpop.f32.mrb[0].mxu0
        %1475 = vmatprep.mubr.f32.mxu0 0.0
        %1476 = vmatmul.mubr.f32.gmra.mrb[0].mxu0 %v1354
        %v1477 = vpop.f32.mrb[0].mxu0
        %v1478 = vadd.f32 %v1385, %v1477
        %v1479 = vpop.f32.mrb[0].mxu0
        %1480 = vmatprep.mubr.f32.mxu0 0.0
        %1481 = vmatmul.mubr.f32.gmra.mrb[0].mxu0 %v1355
        %v1482 = vpop.f32.mrb[0].mxu0
        %v1483 = vadd.f32 %v1385, %v1482
        %v1484 = vpop.f32.mrb[0].mxu0
        %1485 = vmatprep.mubr.f32.mxu0 0.0
        %1486 = vmatmul.mubr.f32.gmra.mrb[0].mxu0 %v1356
        %v1487 = vpop.f32.mrb[0].mxu0
        %v1488 = vadd.f32 %v1385, %v1487
        %v1489 = vpop.f32.mrb[0].mxu0
        %1490 = vmatprep.mubr.f32.mxu0 0.0
        %1491 = vmatmul.mubr.f32.gmra.mrb[0].mxu0 %v1357
        %v1492 = vpop.f32.mrb[0].mxu0
        %v1493 = vadd.f32 %v1385, %v1492
        %v1494 = vpop.f32.mrb[0].mxu0
        %1495 = vmatprep.mubr.f32.mxu0 0.0
        %1496 = vmatmul.mubr.f32.gmra.mrb[0].mxu0 %v1358
        %v1497 = vpop.f32.mrb[0].mxu0
        %v1498 = vadd.f32 %v1385, %v1497
        %v1499 = vpop.f32.mrb[0].mxu0
        %1500 = vmatprep.mubr.f32.mxu0 0.0
        %1501 = vmatmul.mubr.f32.gmra.mrb[0].mxu0 %v1359
        %v1502 = vpop.f32.mrb[0].mxu0
        %v1503 = vadd.f32 %v1385, %v1502
        %v1504 = vpop.f32.mrb[0].mxu0
        %1505 = vmatprep.mubr.f32.mxu0 0.0
        %1506 = vmatmul.mubr.f32.gmra.mrb[0].mxu0 %v1360
        %v1507 = vpop.f32.mrb[0].mxu0
        %v1508 = vadd.f32 %v1385, %v1507
        %v1509 = vpop.f32.mrb[0].mxu0
        %1510 = vmatprep.mubr.f32.mxu0 0.0
        %1511 = vmatmul.mubr.f32.gmra.mrb[0].mxu0 %v1361
        %v1512 = vpop.f32.mrb[0].mxu0
        %v1513 = vadd.f32 %v1385, %v1512
        %v1514 = vpop.f32.mrb[0].mxu0
        %1515 = vmatprep.mubr.f32.mxu0 0.0
        %1516 = vmatmul.mubr.f32.gmra.mrb[0].mxu0 %v1362
        %v1517 = vpop.f32.mrb[0].mxu0
        %v1518 = vadd.f32 %v1385, %v1517
        %v1519 = vpop.f32.mrb[0].mxu0
        %1520 = vmatprep.mubr.f32.mxu0 0.0
        %1521 = vmatmul.mubr.f32.gmra.mrb[0].mxu0 %v1363
        %v1522 = vpop.f32.mrb[0].mxu0
        %v1523 = vadd.f32 %v1385, %v1522
        %v1524 = vpop.f32.mrb[0].mxu0
        %1525 = vmatprep.mubr.f32.mxu0 0.0
        %1526 = vmatmul.mubr.f32.gmra.mrb[0].mxu0 %v1364
        %v1527 = vpop.f32.mrb[0].mxu0
        %v1528 = vadd.f32 %v1385, %v1527
        %v1529 = vpop.f32.mrb[0].mxu0
        %1530 = vdwg.mxu0
        %1531 = vst [vmem:[%s327] sm:$0xff] %v1453
        %1532 = vst [vmem:[%s327 + $0x8] sm:$0xff] %v1458
        %1533 = vst [vmem:[%s327 + $0x10] sm:$0xff] %v1463
        %1534 = vst [vmem:[%s327 + $0x18] sm:$0xff] %v1468
        %1535 = vst [vmem:[%s327 + $0x20] sm:$0xff] %v1473
        %1536 = vst [vmem:[%s327 + $0x28] sm:$0xff] %v1478
        %1537 = vst [vmem:[%s327 + $0x30] sm:$0xff] %v1483
        %1538 = vst [vmem:[%s327 + $0x38] sm:$0xff] %v1488
        %1539 = vst [vmem:[%s327 + $0x40] sm:$0xff] %v1493
        %1540 = vst [vmem:[%s327 + $0x48] sm:$0xff] %v1498
        %1541 = vst [vmem:[%s327 + $0x50] sm:$0xff] %v1503
        %1542 = vst [vmem:[%s327 + $0x58] sm:$0xff] %v1508
        %1543 = vst [vmem:[%s327 + $0x60] sm:$0xff] %v1513
        %1544 = vst [vmem:[%s327 + $0x68] sm:$0xff] %v1518
        %1545 = vst [vmem:[%s327 + $0x70] sm:$0xff] %v1523
        %1546 = vst [vmem:[%s327 + $0x78] sm:$0xff] %v1528
        %s1547 = sand.u32 %s93, 1
        %s1548 = scalar_lea.sflag [#allocation4], %s1547
        %s1549 = sand.u32 %s93, 1
        %s1550 = smul.addr %s1549, 128
        %s1551 = scalar_lea.vmem [#allocation3], %s1550
        // Predicated region
        $region71: #{tpu_custom_call.1} parent=65 // pred_check
          %p1552 = pneg %p103
        $region72: #{tpu_custom_call.1} parent=65 // pred_check_branch
          %1554 = sbr.rel (%p1552) target = $region74
        $region73: #{tpu_custom_call.1} parent=65 // pred_region
          %s1555 = smul.u32 16, %s17
          %s1557 = ssub.s32 2048, 2048
          %1558 = vsyncadd %s1548, %s1557
          %s1559 = smul.addr %s1555, 128
          %s1560 = scalar_lea.hbm %s3, %s1559
          %s1561 = sshll.u32 %s1551, 4
          %s1562 = int_to_ptr.vmem [resolvable:$true] %s1561
          %1567 = dma.vmem_to_hbm [thread:$0]  %s1562, 2048, %s1560, %s1548, 128, 128, 8
        $region74: #{tpu_custom_call.1} parent=65 // pred_fallthru
          _
      $region66: #{tpu_custom_call.1} parent=5 // pred_fallthru
        _
      %p1568 = scmp.le.s32.totalorder 2, %s12
      // Predicated region
      $region75: #{tpu_custom_call.1} parent=5 // pred_check
        %p1569 = pneg %p1568
      $region76: #{tpu_custom_call.1} parent=5 // pred_check_branch
        %1571 = sbr.rel (%p1569) target = $region78
      $region77: #{tpu_custom_call.1} parent=5 // pred_region
        %s1572 = ssub.s32 %s12, 2
        // Predicated region
        $region79: #{tpu_custom_call.1} parent=77 // pred_check
          %p1573 = pneg %p109
        $region80: #{tpu_custom_call.1} parent=77 // pred_check_branch
          %1575 = sbr.rel (%p1573) target = $region82
        $region81: #{tpu_custom_call.1} parent=77 // pred_region
          %s1576 = sand.u32 %s94, 1
          %s1577 = scalar_lea.sflag [#allocation4], %s1576
          %s1578 = sand.u32 %s94, 1
          %s1579 = smul.addr %s1578, 128
          %s1580 = scalar_lea.vmem [#allocation3], %s1579
          %1581 = dma.done %s1577, 2048
        $region82: #{tpu_custom_call.1} parent=77 // pred_fallthru
          _
      $region78: #{tpu_custom_call.1} parent=5 // pred_fallthru
        _
    $region6: #{tpu_custom_call.1} parent=1 // loop_footer
      %s16 = sadd.s32 1, %s12
    $region7: #{tpu_custom_call.1} parent=1 // loop_footer_branch
      %11 = sbr.rel target = $region3
    $region8: #{tpu_custom_call.1} parent=1 // loop_exit
      _
    %1582 = vsyncpa [#allocation4], 1
    %s1583 = scalar_lea.sflag [#allocation4], 1
    %1584 = vsyncpa %s1583, 1

</llo_original>
